<compile_context>
chip_gen: v5e
topology: v5e:2x2
jax: 0.10.0
libtpu: 0.0.40
codegen_flags: <defaults>
</compile_context>

<pallas_src>
import functools

import jax
import jax.numpy as jnp
from jax.experimental import pallas as pl
from jax.experimental.pallas import tpu as pltpu

NEG_SLOPE = 0.01  # nn.LeakyReLU default negative_slope


def _leaky_relu(x):
    return jnp.where(x > 0, x, NEG_SLOPE * x)


def _bf16(a):
    return a if a.dtype == jnp.bfloat16 else a.astype(jnp.bfloat16)


def _temporal_block_kernel(x_ref, w1_ref, w2_ref, wds_ref, b_ref, out_ref,
                           xh_ref, hh_ref, *,
                           kernel_size, dilation, padding, use_downsample):
    """Grid = (N, L // LT); the batch block dim is squeezed.

    x_ref   : (C_in, LT)        bf16 (downsample path) / f32 (identity path)
    w1_ref  : (C_out, K*C_in)   bf16 conv1 weight, taps folded tap-major
    w2_ref  : (C_out, K*C_out)  bf16 conv2 weight, taps folded tap-major
    wds_ref : (C_out, C_in)     bf16 1x1 downsample weight (unused if identity)
    b_ref   : (C_out, 3)        f32  [b1 | b2 | b_downsample]
    out_ref : (C_out, LT)
    xh_ref  : (C_in,  max(p,1)) scratch: carried causal x halo
    hh_ref  : (C_out, max(p,1)) scratch: carried causal conv1-activation halo

    NOTE: the L axis must stay the innermost ("arbitrary") grid axis -- the
    causal halo scratch is carried across L steps and re-zeroed at l == 0, so
    reordering the grid (L outer) would corrupt the carry.
    """
    K, d, p = kernel_size, dilation, padding
    c_in, LT = x_ref.shape
    c_out = out_ref.shape[0]
    l = pl.program_id(1)

    x_tile = x_ref[...]

    if p > 0:
        @pl.when(l == 0)                        # causal left edge of each batch
        def _():
            xh_ref[...] = jnp.zeros_like(xh_ref)
            hh_ref[...] = jnp.zeros_like(hh_ref)
        x_ext = jnp.concatenate([xh_ref[...], x_tile], axis=-1)   # (C_in, p+LT)
        xh_ref[...] = x_ext[:, LT:LT + p]       # carry last p cols to next tile
    else:
        x_ext = x_tile

    # ---- conv1: K accumulating MXU matmuls over lane-shifted views ---------
    # (no im2col slab; tap K-1 sits at offset p == (K-1)*d and is exactly the
    #  fresh tile.  Further lever: route the k*d shifts through pltpu.roll.)
    acc1 = jnp.dot(w1_ref[:, (K - 1) * c_in:], _bf16(x_tile),
                   preferred_element_type=jnp.float32)
    for k in range(K - 1):
        acc1 = acc1 + jnp.dot(w1_ref[:, k * c_in:(k + 1) * c_in],
                              _bf16(x_ext[:, k * d:k * d + LT]),
                              preferred_element_type=jnp.float32)
    h = _leaky_relu(acc1 + b_ref[:, 0:1])       # f32; dropout1 = identity (eval)
    h_bf = h.astype(jnp.bfloat16)               # next-matmul operand

    # ---- conv2: same scheme on the conv1 activation (own carried halo) -----
    if p > 0:
        h_ext = jnp.concatenate([hh_ref[...], h_bf], axis=-1)     # (C_out, p+LT)
        hh_ref[...] = h_ext[:, LT:LT + p]
    acc2 = jnp.dot(w2_ref[:, (K - 1) * c_out:], h_bf,
                   preferred_element_type=jnp.float32)
    for k in range(K - 1):
        acc2 = acc2 + jnp.dot(w2_ref[:, k * c_out:(k + 1) * c_out],
                              h_ext[:, k * d:k * d + LT],
                              preferred_element_type=jnp.float32)
    o = _leaky_relu(acc2 + b_ref[:, 1:2])       # dropout2 = identity (eval)

    # ---- residual + fused final LeakyReLU + lane-dense store ---------------
    if use_downsample:
        res = jnp.dot(wds_ref[...], _bf16(x_tile),
                      preferred_element_type=jnp.float32) + b_ref[:, 2:3]
    else:
        res = x_tile.astype(jnp.float32)        # identity keeps input precision
    out_ref[...] = _leaky_relu(o + res).astype(out_ref.dtype)


def _vmem_capacity_bytes():
    try:
        return int(pltpu.get_tpu_info().vmem_capacity_bytes)
    except Exception:
        return 64 * 1024 * 1024                 # conservative (v7x-sized) fallback


def _vmem_estimate(lt, c_in, c_out, K, p, x_bytes, out_bytes):
    """Per-step VMEM bytes: double-buffered I/O tiles, weights, halos and the
    in-kernel temporaries (ext buffers, tap views, f32 accumulators)."""
    hp = max(p, 1)
    tile_io = 2 * c_in * lt * x_bytes + 2 * c_out * lt * out_bytes
    weights = 2 * ((c_out * K * c_in + c_out * K * c_out + c_out * c_in) * 2
                   + c_out * 3 * 4)
    halos = (c_in * x_bytes + c_out * 2) * hp
    temps = (c_in * (p + lt) * x_bytes                 # x_ext
             + c_out * (p + lt) * 2                    # h_ext
             + (K - 1) * (c_in + c_out) * lt * 2       # shifted tap views
             + c_out * lt * (2 + 4 * 4))               # h_bf + acc1/acc2/res/y
    return tile_io + weights + halos + temps


def temporal_block_forward(x, w1, b1, w2, b2, wds=None, bds=None, *,
                           kernel_size, stride, dilation, padding,
                           l_tile=None, out_dtype=jnp.float32):
    """Fused TemporalBlock forward.

    x: (N, C_in, L); w1: (C_out, C_in, K), w2: (C_out, C_out, K) in PyTorch
    Conv1d layout (weight-norm already applied); wds: (C_out, C_in),
    b1/b2/bds: (C_out,).  Returns (N, C_out, L) in out_dtype (use bfloat16
    when stacking blocks to halve HBM writeback)."""
    assert stride == 1, "TCN TemporalBlock is used with stride=1"
    N, c_in, L = x.shape
    c_out = w1.shape[0]
    K, p = kernel_size, padding
    assert p == (K - 1) * dilation, (
        "TemporalBlock requires padding == (kernel_size-1)*dilation so the "
        "chomped conv output matches the residual length")
    use_downsample = (c_in != c_out)
    if use_downsample and (wds is None or bds is None):
        raise ValueError("c_in != c_out: downsample weight/bias (wds, bds) required")

    # Channel padding to a sublane multiple (downsample path only: the padded
    # x channels hit zero weight columns, so the output is unchanged).
    if use_downsample:
        pad_c = (-c_in) % 8
        if pad_c:
            x = jnp.pad(x, ((0, 0), (0, pad_c), (0, 0)))
            w1 = jnp.pad(w1, ((0, 0), (0, pad_c), (0, 0)))
            wds = jnp.pad(wds, ((0, 0), (0, pad_c)))
            c_in += pad_c

    # bf16 MXU operands (accumulation stays f32 in-kernel).  Identity-residual
    # path keeps x in f32 so the residual add matches PyTorch precision.
    x_in = x.astype(jnp.bfloat16 if use_downsample else jnp.float32)
    w1f = jnp.transpose(w1, (0, 2, 1)).reshape(c_out, K * c_in).astype(jnp.bfloat16)
    w2f = jnp.transpose(w2, (0, 2, 1)).reshape(c_out, K * c_out).astype(jnp.bfloat16)
    wdsf = (wds.astype(jnp.bfloat16) if use_downsample
            else jnp.zeros((c_out, c_in), jnp.bfloat16))
    bds_ = bds if use_downsample else jnp.zeros((c_out,), jnp.float32)
    bias = jnp.stack([b1, b2, bds_], axis=-1).astype(jnp.float32)     # (C_out, 3)

    x_bytes = jnp.dtype(x_in.dtype).itemsize
    out_bytes = jnp.dtype(out_dtype).itemsize
    vmem_limit = int(0.75 * _vmem_capacity_bytes())   # 48 MiB v7x, 96 MiB v5e/v6e
    if l_tile is None:
        l_tile = L                                    # fallback: full sequence
        for t in (2048, 1024, 512, 256, 128):         # largest lane-aligned tile
            if L % t == 0 and _vmem_estimate(t, c_in, c_out, K, p,
                                             x_bytes, out_bytes) <= vmem_limit // 2:
                l_tile = t
                break
    assert L % l_tile == 0
    assert l_tile == L or l_tile % 128 == 0, "L tile must be lane-aligned"

    kernel = functools.partial(
        _temporal_block_kernel,
        kernel_size=K, dilation=dilation, padding=p,
        use_downsample=use_downsample)
    hp = max(p, 1)                      # avoid zero-width scratch when K == 1

    def build(single_buffer_weights):
        def wspec(shape):
            # Weights/bias never change across the grid; single-buffer them so
            # the saved VMEM goes to larger L tiles.
            if single_buffer_weights:
                return pl.BlockSpec(shape, lambda n, l: (0, 0),
                                    pipeline_mode=pl.Buffered(1))
            return pl.BlockSpec(shape, lambda n, l: (0, 0))

        return pl.pallas_call(
            kernel,
            out_shape=jax.ShapeDtypeStruct((N, c_out, L), out_dtype),
            grid_spec=pltpu.PrefetchScalarGridSpec(
                num_scalar_prefetch=0,
                # batch outer ("parallel": megacore-shardable, keep extent>=2),
                # L inner ("arbitrary": sequential causal halo carry).
                grid=(N, L // l_tile),
                in_specs=[
                    pl.BlockSpec((None, c_in, l_tile), lambda n, l: (n, 0, l)),
                    wspec((c_out, K * c_in)),
                    wspec((c_out, K * c_out)),
                    wspec((c_out, c_in)),
                    wspec((c_out, 3)),
                ],
                out_specs=pl.BlockSpec((None, c_out, l_tile),
                                       lambda n, l: (n, 0, l)),
                scratch_shapes=[
                    pltpu.VMEM((c_in, hp), x_in.dtype),      # x halo
                    pltpu.VMEM((c_out, hp), jnp.bfloat16),   # conv1-act halo
                ],
            ),
            compiler_params=pltpu.CompilerParams(
                dimension_semantics=("parallel", "arbitrary"),
                vmem_limit_bytes=vmem_limit),
        )

    args = (x_in, w1f, w2f, wdsf, bias)
    try:
        return build(True)(*args)
    except Exception:
        # pipeline_mode=pl.Buffered(1) unsupported on this jax/libtpu:
        # fall back to default double-buffered weight blocks.
        return build(False)(*args)


# ---------------- parameter setup (plain JAX glue) ----------------
def _weight_norm(v, g):
    # PyTorch weight_norm with dim=0: w = g * v / ||v||  (norm over dims 1,2)
    norm = jnp.sqrt(jnp.sum(v * v, axis=(1, 2), keepdims=True))
    return g.reshape(-1, 1, 1) * v / norm


def _make_params(key, n_inputs, n_outputs, kernel_size):
    ks = jax.random.split(key, 8)
    v1 = 0.01 * jax.random.normal(ks[0], (n_outputs, n_inputs, kernel_size), jnp.float32)
    g1 = 0.5 + jax.random.uniform(ks[1], (n_outputs,), jnp.float32)
    v2 = 0.01 * jax.random.normal(ks[2], (n_outputs, n_outputs, kernel_size), jnp.float32)
    g2 = 0.5 + jax.random.uniform(ks[3], (n_outputs,), jnp.float32)
    b1 = 0.1 * jax.random.normal(ks[4], (n_outputs,), jnp.float32)
    b2 = 0.1 * jax.random.normal(ks[5], (n_outputs,), jnp.float32)
    wds = 0.01 * jax.random.normal(ks[6], (n_outputs, n_inputs), jnp.float32)
    bds = 0.1 * jax.random.normal(ks[7], (n_outputs,), jnp.float32)
    return (_weight_norm(v1, g1), b1, _weight_norm(v2, g2), b2, wds, bds)


# -------- pure-JAX reference (mirrors PyTorch semantics, bf16 matmul ops) ---
def _reference(x, w1, b1, w2, b2, wds, bds, *, kernel_size, dilation, padding):
    K, d, p = kernel_size, dilation, padding
    N, c_in, L = x.shape
    xb = x.astype(jnp.bfloat16)

    def causal_conv(inp, w, b):
        xp = jnp.pad(inp, ((0, 0), (0, 0), (p, 0)))  # left-pad == pad + Chomp1d
        out = jnp.zeros((N, w.shape[0], L), jnp.float32) + b[None, :, None]
        for k in range(K):
            out = out + jnp.einsum('oc,ncl->nol', w[:, :, k].astype(jnp.bfloat16),
                                   xp[:, :, k * d:k * d + L],
                                   preferred_element_type=jnp.float32)
        return out

    h = _leaky_relu(causal_conv(xb, w1, b1))                 # conv1+chomp+lrelu
    o = _leaky_relu(causal_conv(h.astype(jnp.bfloat16), w2, b2))
    if wds is None:
        res = x.astype(jnp.float32)                          # identity residual
    else:
        res = jnp.einsum('oc,ncl->nol', wds.astype(jnp.bfloat16), xb,
                         preferred_element_type=jnp.float32) + bds[None, :, None]
    return _leaky_relu(o + res)


if __name__ == "__main__":
    key = jax.random.PRNGKey(0)
    kx1, kp1, kx2, kp2 = jax.random.split(key, 4)

    N, L = 2, 256
    kernel_size, stride, dilation = 3, 1, 2
    padding = (kernel_size - 1) * dilation           # causal TCN padding = 4

    # Config A: c_in != c_out (1x1-conv residual).  l_tile=128 gives two L
    # tiles (exercises the carried causal halo), then the default heuristic.
    n_in, n_out = 4, 8
    x = jax.random.normal(kx1, (N, n_in, L), jnp.float32)
    w1, b1, w2, b2, wds, bds = _make_params(kp1, n_in, n_out, kernel_size)
    ref = _reference(x, w1, b1, w2, b2, wds, bds,
                     kernel_size=kernel_size, dilation=dilation, padding=padding)
    for lt in (128, None):
        out = jax.block_until_ready(temporal_block_forward(
            x, w1, b1, w2, b2, wds, bds,
            kernel_size=kernel_size, stride=stride, dilation=dilation,
            padding=padding, l_tile=lt))
        assert out.shape == (N, n_out, L)
        assert jnp.allclose(out, ref, atol=2e-3, rtol=2e-3), f"mismatch (l_tile={lt})"

    # Config B: c_in == c_out (identity residual, downsample is None).
    n_io = 8
    x2 = jax.random.normal(kx2, (N, n_io, L), jnp.float32)
    w1b, b1b, w2b, b2b, _, _ = _make_params(kp2, n_io, n_io, kernel_size)
    ref2 = _reference(x2, w1b, b1b, w2b, b2b, None, None,
                      kernel_size=kernel_size, dilation=dilation, padding=padding)
    out2 = jax.block_until_ready(temporal_block_forward(
        x2, w1b, b1b, w2b, b2b, None, None,
        kernel_size=kernel_size, stride=stride, dilation=dilation,
        padding=padding, l_tile=128))
    assert out2.shape == (N, n_io, L)
    assert jnp.allclose(out2, ref2, atol=2e-3, rtol=2e-3), "mismatch (identity residual)"

    print("KERNEL_OK")
</pallas_src>

<mosaic_0001>
module attributes {stable_mosaic.version = 11 : i64} {
  func.func @_temporal_block_kernel(%arg0: i32, %arg1: i32, %arg2: memref<1x8x128xbf16, #tpu.memory_space<vmem>>, %arg3: memref<8x24xbf16, #tpu.memory_space<vmem>>, %arg4: memref<8x24xbf16, #tpu.memory_space<vmem>>, %arg5: memref<8x8xbf16, #tpu.memory_space<vmem>>, %arg6: memref<8x3xf32, #tpu.memory_space<vmem>>, %arg7: memref<1x8x128xf32, #tpu.memory_space<vmem>>, %arg8: memref<8x4xbf16, #tpu.memory_space<vmem>>, %arg9: memref<8x4xbf16, #tpu.memory_space<vmem>>) attributes {dimension_semantics = [#tpu.dimension_semantics<parallel>, #tpu.dimension_semantics<arbitrary>], iteration_bounds = array<i64: 2, 2>, scalar_prefetch = 0 : i64, scratch_operands = 2 : i64, tpu.core_type = #tpu.core_type<tc>, window_params = [{transform_indices = @transform_0, window_bounds = array<i64: 1, 8, 128>}, {pipeline_mode = #tpu.pipeline_mode<synchronous>, transform_indices = @transform_1, window_bounds = array<i64: 8, 24>}, {pipeline_mode = #tpu.pipeline_mode<synchronous>, transform_indices = @transform_2, window_bounds = array<i64: 8, 24>}, {pipeline_mode = #tpu.pipeline_mode<synchronous>, transform_indices = @transform_3, window_bounds = array<i64: 8, 8>}, {pipeline_mode = #tpu.pipeline_mode<synchronous>, transform_indices = @transform_4, window_bounds = array<i64: 8, 3>}, {transform_indices = @transform_5, window_bounds = array<i64: 1, 8, 128>}]} {
    %c0 = arith.constant 0 : index
    %c0_0 = arith.constant 0 : index
    %c0_1 = arith.constant 0 : index
    %0 = vector.load %arg2[%c0, %c0_0, %c0_1] : memref<1x8x128xbf16, #tpu.memory_space<vmem>>, vector<1x8x128xbf16>
    %1 = vector.shape_cast %0 : vector<1x8x128xbf16> to vector<8x128xbf16>
    %c0_i32 = arith.constant 0 : i32
    %2 = arith.cmpi eq, %arg1, %c0_i32 : i32
    %3 = arith.extui %2 : i1 to i32
    %c0_i32_2 = arith.constant 0 : i32
    %4 = arith.cmpi ne, %3, %c0_i32_2 : i32
    scf.if %4 {
      %cst_42 = arith.constant 0.000000e+00 : bf16
      %64 = vector.broadcast %cst_42 : bf16 to vector<8x4xbf16>
      %c0_43 = arith.constant 0 : index
      %c0_44 = arith.constant 0 : index
      %65 = vector.load %arg8[%c0_43, %c0_44] : memref<8x4xbf16, #tpu.memory_space<vmem>>, vector<8x4xbf16>
      tpu.vector_store %arg8[%c0_43, %c0_44], %64 {strides = array<i32>} : memref<8x4xbf16, #tpu.memory_space<vmem>>, vector<8x4xbf16>,
      %cst_45 = arith.constant 0.000000e+00 : bf16
      %66 = vector.broadcast %cst_45 : bf16 to vector<8x4xbf16>
      %c0_46 = arith.constant 0 : index
      %c0_47 = arith.constant 0 : index
      %67 = vector.load %arg9[%c0_46, %c0_47] : memref<8x4xbf16, #tpu.memory_space<vmem>>, vector<8x4xbf16>
      tpu.vector_store %arg9[%c0_46, %c0_47], %66 {strides = array<i32>} : memref<8x4xbf16, #tpu.memory_space<vmem>>, vector<8x4xbf16>,
    } else {
    }
    %c0_3 = arith.constant 0 : index
    %c0_4 = arith.constant 0 : index
    %5 = vector.load %arg8[%c0_3, %c0_4] : memref<8x4xbf16, #tpu.memory_space<vmem>>, vector<8x4xbf16>
    %6 = tpu.concatenate %5, %1 in 1 : vector<8x4xbf16>, vector<8x128xbf16> -> vector<8x132xbf16>
    %7 = vector.extract_strided_slice %6 {offsets = [0, 128], sizes = [8, 4], strides = [1, 1]} : vector<8x132xbf16> to vector<8x4xbf16>
    %c0_5 = arith.constant 0 : index
    %c0_6 = arith.constant 0 : index
    %8 = vector.load %arg8[%c0_5, %c0_6] : memref<8x4xbf16, #tpu.memory_space<vmem>>, vector<8x4xbf16>
    tpu.vector_store %arg8[%c0_5, %c0_6], %7 {strides = array<i32>} : memref<8x4xbf16, #tpu.memory_space<vmem>>, vector<8x4xbf16>,
    %c0_7 = arith.constant 0 : index
    %c16 = arith.constant 16 : index
    %9 = vector.load %arg3[%c0_7, %c16] : memref<8x24xbf16, #tpu.memory_space<vmem>>, vector<8x8xbf16>
    %cst = arith.constant dense<0.000000e+00> : vector<8x128xf32>
    %10 = tpu.matmul %9, %1, %cst {dimension_numbers = #tpu.dot_dimension_numbers<[1], [0], [0], [1], [0, 0, 1, 1], [], []>} : vector<8x8xbf16>, vector<8x128xbf16>, vector<8x128xf32> -> vector<8x128xf32>
    %c0_8 = arith.constant 0 : index
    %c0_9 = arith.constant 0 : index
    %11 = vector.load %arg3[%c0_8, %c0_9] : memref<8x24xbf16, #tpu.memory_space<vmem>>, vector<8x8xbf16>
    %12 = vector.extract_strided_slice %6 {offsets = [0, 0], sizes = [8, 128], strides = [1, 1]} : vector<8x132xbf16> to vector<8x128xbf16>
    %cst_10 = arith.constant dense<0.000000e+00> : vector<8x128xf32>
    %13 = tpu.matmul %11, %12, %cst_10 {dimension_numbers = #tpu.dot_dimension_numbers<[1], [0], [0], [1], [0, 0, 1, 1], [], []>} : vector<8x8xbf16>, vector<8x128xbf16>, vector<8x128xf32> -> vector<8x128xf32>
    %14 = arith.addf %10, %13 : vector<8x128xf32>
    %c0_11 = arith.constant 0 : index
    %c8 = arith.constant 8 : index
    %15 = vector.load %arg3[%c0_11, %c8] : memref<8x24xbf16, #tpu.memory_space<vmem>>, vector<8x8xbf16>
    %16 = vector.extract_strided_slice %6 {offsets = [0, 2], sizes = [8, 128], strides = [1, 1]} : vector<8x132xbf16> to vector<8x128xbf16>
    %cst_12 = arith.constant dense<0.000000e+00> : vector<8x128xf32>
    %17 = tpu.matmul %15, %16, %cst_12 {dimension_numbers = #tpu.dot_dimension_numbers<[1], [0], [0], [1], [0, 0, 1, 1], [], []>} : vector<8x8xbf16>, vector<8x128xbf16>, vector<8x128xf32> -> vector<8x128xf32>
    %18 = arith.addf %14, %17 : vector<8x128xf32>
    %c0_13 = arith.constant 0 : index
    %c0_14 = arith.constant 0 : index
    %19 = vector.load %arg6[%c0_13, %c0_14] : memref<8x3xf32, #tpu.memory_space<vmem>>, vector<8x1xf32>
    %20 = vector.broadcast %19 : vector<8x1xf32> to vector<8x128xf32>
    %21 = arith.addf %18, %20 : vector<8x128xf32>
    %cst_15 = arith.constant 0.000000e+00 : f32
    %22 = vector.broadcast %cst_15 : f32 to vector<8x128xf32>
    %23 = arith.cmpf ogt, %21, %22 : vector<8x128xf32>
    %cst_16 = arith.constant 0.00999999977 : f32
    %24 = vector.broadcast %cst_16 : f32 to vector<8x128xf32>
    %25 = arith.mulf %24, %21 : vector<8x128xf32>
    %26 = arith.select %23, %21, %25 : vector<8x128xi1>, vector<8x128xf32>
    %27 = arith.truncf %26 : vector<8x128xf32> to vector<8x128xbf16>
    %c0_17 = arith.constant 0 : index
    %c0_18 = arith.constant 0 : index
    %28 = vector.load %arg9[%c0_17, %c0_18] : memref<8x4xbf16, #tpu.memory_space<vmem>>, vector<8x4xbf16>
    %29 = tpu.concatenate %28, %27 in 1 : vector<8x4xbf16>, vector<8x128xbf16> -> vector<8x132xbf16>
    %30 = vector.extract_strided_slice %29 {offsets = [0, 128], sizes = [8, 4], strides = [1, 1]} : vector<8x132xbf16> to vector<8x4xbf16>
    %c0_19 = arith.constant 0 : index
    %c0_20 = arith.constant 0 : index
    %31 = vector.load %arg9[%c0_19, %c0_20] : memref<8x4xbf16, #tpu.memory_space<vmem>>, vector<8x4xbf16>
    tpu.vector_store %arg9[%c0_19, %c0_20], %30 {strides = array<i32>} : memref<8x4xbf16, #tpu.memory_space<vmem>>, vector<8x4xbf16>,
    %c0_21 = arith.constant 0 : index
    %c16_22 = arith.constant 16 : index
    %32 = vector.load %arg4[%c0_21, %c16_22] : memref<8x24xbf16, #tpu.memory_space<vmem>>, vector<8x8xbf16>
    %cst_23 = arith.constant dense<0.000000e+00> : vector<8x128xf32>
    %33 = tpu.matmul %32, %27, %cst_23 {dimension_numbers = #tpu.dot_dimension_numbers<[1], [0], [0], [1], [0, 0, 1, 1], [], []>} : vector<8x8xbf16>, vector<8x128xbf16>, vector<8x128xf32> -> vector<8x128xf32>
    %c0_24 = arith.constant 0 : index
    %c0_25 = arith.constant 0 : index
    %34 = vector.load %arg4[%c0_24, %c0_25] : memref<8x24xbf16, #tpu.memory_space<vmem>>, vector<8x8xbf16>
    %35 = vector.extract_strided_slice %29 {offsets = [0, 0], sizes = [8, 128], strides = [1, 1]} : vector<8x132xbf16> to vector<8x128xbf16>
    %cst_26 = arith.constant dense<0.000000e+00> : vector<8x128xf32>
    %36 = tpu.matmul %34, %35, %cst_26 {dimension_numbers = #tpu.dot_dimension_numbers<[1], [0], [0], [1], [0, 0, 1, 1], [], []>} : vector<8x8xbf16>, vector<8x128xbf16>, vector<8x128xf32> -> vector<8x128xf32>
    %37 = arith.addf %33, %36 : vector<8x128xf32>
    %c0_27 = arith.constant 0 : index
    %c8_28 = arith.constant 8 : index
    %38 = vector.load %arg4[%c0_27, %c8_28] : memref<8x24xbf16, #tpu.memory_space<vmem>>, vector<8x8xbf16>
    %39 = vector.extract_strided_slice %29 {offsets = [0, 2], sizes = [8, 128], strides = [1, 1]} : vector<8x132xbf16> to vector<8x128xbf16>
    %cst_29 = arith.constant dense<0.000000e+00> : vector<8x128xf32>
    %40 = tpu.matmul %38, %39, %cst_29 {dimension_numbers = #tpu.dot_dimension_numbers<[1], [0], [0], [1], [0, 0, 1, 1], [], []>} : vector<8x8xbf16>, vector<8x128xbf16>, vector<8x128xf32> -> vector<8x128xf32>
    %41 = arith.addf %37, %40 : vector<8x128xf32>
    %c0_30 = arith.constant 0 : index
    %c1 = arith.constant 1 : index
    %42 = vector.load %arg6[%c0_30, %c1] : memref<8x3xf32, #tpu.memory_space<vmem>>, vector<8x1xf32>
    %43 = vector.broadcast %42 : vector<8x1xf32> to vector<8x128xf32>
    %44 = arith.addf %41, %43 : vector<8x128xf32>
    %cst_31 = arith.constant 0.000000e+00 : f32
    %45 = vector.broadcast %cst_31 : f32 to vector<8x128xf32>
    %46 = arith.cmpf ogt, %44, %45 : vector<8x128xf32>
    %cst_32 = arith.constant 0.00999999977 : f32
    %47 = vector.broadcast %cst_32 : f32 to vector<8x128xf32>
    %48 = arith.mulf %47, %44 : vector<8x128xf32>
    %49 = arith.select %46, %44, %48 : vector<8x128xi1>, vector<8x128xf32>
    %c0_33 = arith.constant 0 : index
    %c0_34 = arith.constant 0 : index
    %50 = vector.load %arg5[%c0_33, %c0_34] : memref<8x8xbf16, #tpu.memory_space<vmem>>, vector<8x8xbf16>
    %cst_35 = arith.constant dense<0.000000e+00> : vector<8x128xf32>
    %51 = tpu.matmul %50, %1, %cst_35 {dimension_numbers = #tpu.dot_dimension_numbers<[1], [0], [0], [1], [0, 0, 1, 1], [], []>} : vector<8x8xbf16>, vector<8x128xbf16>, vector<8x128xf32> -> vector<8x128xf32>
    %c0_36 = arith.constant 0 : index
    %c2 = arith.constant 2 : index
    %52 = vector.load %arg6[%c0_36, %c2] : memref<8x3xf32, #tpu.memory_space<vmem>>, vector<8x1xf32>
    %53 = vector.broadcast %52 : vector<8x1xf32> to vector<8x128xf32>
    %54 = arith.addf %51, %53 : vector<8x128xf32>
    %55 = arith.addf %49, %54 : vector<8x128xf32>
    %cst_37 = arith.constant 0.000000e+00 : f32
    %56 = vector.broadcast %cst_37 : f32 to vector<8x128xf32>
    %57 = arith.cmpf ogt, %55, %56 : vector<8x128xf32>
    %cst_38 = arith.constant 0.00999999977 : f32
    %58 = vector.broadcast %cst_38 : f32 to vector<8x128xf32>
    %59 = arith.mulf %58, %55 : vector<8x128xf32>
    %60 = arith.select %57, %55, %59 : vector<8x128xi1>, vector<8x128xf32>
    %c0_39 = arith.constant 0 : index
    %c0_40 = arith.constant 0 : index
    %c0_41 = arith.constant 0 : index
    %61 = vector.load %arg7[%c0_39, %c0_40, %c0_41] : memref<1x8x128xf32, #tpu.memory_space<vmem>>, vector<1x8x128xf32>
    %62 = vector.shape_cast %61 : vector<1x8x128xf32> to vector<8x128xf32>
    %63 = vector.shape_cast %60 : vector<8x128xf32> to vector<1x8x128xf32>
    tpu.vector_store %arg7[%c0_39, %c0_40, %c0_41], %63 {strides = array<i32>} : memref<1x8x128xf32, #tpu.memory_space<vmem>>, vector<1x8x128xf32>,
    return
  }
  func.func @transform_0(%arg0: i32, %arg1: i32) -> (i32, i32, i32) {
    %c0_i32 = arith.constant 0 : i32
    %c0_i32_0 = arith.constant 0 : i32
    return %arg0, %c0_i32, %arg1 : i32, i32, i32
  }
  func.func @transform_1(%arg0: i32, %arg1: i32) -> (i32, i32) {
    %c0_i32 = arith.constant 0 : i32
    %c0_i32_0 = arith.constant 0 : i32
    %c0_i32_1 = arith.constant 0 : i32
    return %c0_i32, %c0_i32_0 : i32, i32
  }
  func.func @transform_2(%arg0: i32, %arg1: i32) -> (i32, i32) {
    %c0_i32 = arith.constant 0 : i32
    %c0_i32_0 = arith.constant 0 : i32
    %c0_i32_1 = arith.constant 0 : i32
    return %c0_i32, %c0_i32_0 : i32, i32
  }
  func.func @transform_3(%arg0: i32, %arg1: i32) -> (i32, i32) {
    %c0_i32 = arith.constant 0 : i32
    %c0_i32_0 = arith.constant 0 : i32
    %c0_i32_1 = arith.constant 0 : i32
    return %c0_i32, %c0_i32_0 : i32, i32
  }
  func.func @transform_4(%arg0: i32, %arg1: i32) -> (i32, i32) {
    %c0_i32 = arith.constant 0 : i32
    %c0_i32_0 = arith.constant 0 : i32
    %c0_i32_1 = arith.constant 0 : i32
    return %c0_i32, %c0_i32_0 : i32, i32
  }
  func.func @transform_5(%arg0: i32, %arg1: i32) -> (i32, i32, i32) {
    %c0_i32 = arith.constant 0 : i32
    %c0_i32_0 = arith.constant 0 : i32
    return %arg0, %c0_i32, %arg1 : i32, i32, i32
  }
}

module attributes {stable_mosaic.version = 11 : i64} {
  func.func @_temporal_block_kernel(%arg0: i32, %arg1: i32, %arg2: memref<1x8x128xbf16, #tpu.memory_space<vmem>>, %arg3: memref<8x24xbf16, #tpu.memory_space<vmem>>, %arg4: memref<8x24xbf16, #tpu.memory_space<vmem>>, %arg5: memref<8x8xbf16, #tpu.memory_space<vmem>>, %arg6: memref<8x3xf32, #tpu.memory_space<vmem>>, %arg7: memref<1x8x128xf32, #tpu.memory_space<vmem>>, %arg8: memref<8x4xbf16, #tpu.memory_space<vmem>>, %arg9: memref<8x4xbf16, #tpu.memory_space<vmem>>) attributes {dimension_semantics = [#tpu.dimension_semantics<parallel>, #tpu.dimension_semantics<arbitrary>], iteration_bounds = array<i64: 2, 2>, scalar_prefetch = 0 : i64, scratch_operands = 2 : i64, tpu.core_type = #tpu.core_type<tc>, window_params = [{transform_indices = @transform_0, window_bounds = array<i64: 1, 8, 128>}, {pipeline_mode = #tpu.pipeline_mode<synchronous>, transform_indices = @transform_1, window_bounds = array<i64: 8, 24>}, {pipeline_mode = #tpu.pipeline_mode<synchronous>, transform_indices = @transform_2, window_bounds = array<i64: 8, 24>}, {pipeline_mode = #tpu.pipeline_mode<synchronous>, transform_indices = @transform_3, window_bounds = array<i64: 8, 8>}, {pipeline_mode = #tpu.pipeline_mode<synchronous>, transform_indices = @transform_4, window_bounds = array<i64: 8, 3>}, {transform_indices = @transform_5, window_bounds = array<i64: 1, 8, 128>}]} {
    %c0 = arith.constant 0 : index
    %c0_0 = arith.constant 0 : index
    %c0_1 = arith.constant 0 : index
    %0 = vector.load %arg2[%c0, %c0_0, %c0_1] : memref<1x8x128xbf16, #tpu.memory_space<vmem>>, vector<1x8x128xbf16>
    %1 = vector.shape_cast %0 : vector<1x8x128xbf16> to vector<8x128xbf16>
    %c0_i32 = arith.constant 0 : i32
    %2 = arith.cmpi eq, %arg1, %c0_i32 : i32
    %3 = arith.extui %2 : i1 to i32
    %c0_i32_2 = arith.constant 0 : i32
    %4 = arith.cmpi ne, %3, %c0_i32_2 : i32
    scf.if %4 {
      %cst_42 = arith.constant 0.000000e+00 : bf16
      %64 = vector.broadcast %cst_42 : bf16 to vector<8x4xbf16>
      %c0_43 = arith.constant 0 : index
      %c0_44 = arith.constant 0 : index
      %65 = vector.load %arg8[%c0_43, %c0_44] : memref<8x4xbf16, #tpu.memory_space<vmem>>, vector<8x4xbf16>
      tpu.vector_store %arg8[%c0_43, %c0_44], %64 {strides = array<i32>} : memref<8x4xbf16, #tpu.memory_space<vmem>>, vector<8x4xbf16>,
      %cst_45 = arith.constant 0.000000e+00 : bf16
      %66 = vector.broadcast %cst_45 : bf16 to vector<8x4xbf16>
      %c0_46 = arith.constant 0 : index
      %c0_47 = arith.constant 0 : index
      %67 = vector.load %arg9[%c0_46, %c0_47] : memref<8x4xbf16, #tpu.memory_space<vmem>>, vector<8x4xbf16>
      tpu.vector_store %arg9[%c0_46, %c0_47], %66 {strides = array<i32>} : memref<8x4xbf16, #tpu.memory_space<vmem>>, vector<8x4xbf16>,
    } else {
    }
    %c0_3 = arith.constant 0 : index
    %c0_4 = arith.constant 0 : index
    %5 = vector.load %arg8[%c0_3, %c0_4] : memref<8x4xbf16, #tpu.memory_space<vmem>>, vector<8x4xbf16>
    %6 = tpu.concatenate %5, %1 in 1 : vector<8x4xbf16>, vector<8x128xbf16> -> vector<8x132xbf16>
    %7 = vector.extract_strided_slice %6 {offsets = [0, 128], sizes = [8, 4], strides = [1, 1]} : vector<8x132xbf16> to vector<8x4xbf16>
    %c0_5 = arith.constant 0 : index
    %c0_6 = arith.constant 0 : index
    %8 = vector.load %arg8[%c0_5, %c0_6] : memref<8x4xbf16, #tpu.memory_space<vmem>>, vector<8x4xbf16>
    tpu.vector_store %arg8[%c0_5, %c0_6], %7 {strides = array<i32>} : memref<8x4xbf16, #tpu.memory_space<vmem>>, vector<8x4xbf16>,
    %c0_7 = arith.constant 0 : index
    %c16 = arith.constant 16 : index
    %9 = vector.load %arg3[%c0_7, %c16] : memref<8x24xbf16, #tpu.memory_space<vmem>>, vector<8x8xbf16>
    %cst = arith.constant dense<0.000000e+00> : vector<8x128xf32>
    %10 = tpu.matmul %9, %1, %cst {dimension_numbers = #tpu.dot_dimension_numbers<[1], [0], [0], [1], [0, 0, 1, 1], [], []>} : vector<8x8xbf16>, vector<8x128xbf16>, vector<8x128xf32> -> vector<8x128xf32>
    %c0_8 = arith.constant 0 : index
    %c0_9 = arith.constant 0 : index
    %11 = vector.load %arg3[%c0_8, %c0_9] : memref<8x24xbf16, #tpu.memory_space<vmem>>, vector<8x8xbf16>
    %12 = vector.extract_strided_slice %6 {offsets = [0, 0], sizes = [8, 128], strides = [1, 1]} : vector<8x132xbf16> to vector<8x128xbf16>
    %cst_10 = arith.constant dense<0.000000e+00> : vector<8x128xf32>
    %13 = tpu.matmul %11, %12, %cst_10 {dimension_numbers = #tpu.dot_dimension_numbers<[1], [0], [0], [1], [0, 0, 1, 1], [], []>} : vector<8x8xbf16>, vector<8x128xbf16>, vector<8x128xf32> -> vector<8x128xf32>
    %14 = arith.addf %10, %13 : vector<8x128xf32>
    %c0_11 = arith.constant 0 : index
    %c8 = arith.constant 8 : index
    %15 = vector.load %arg3[%c0_11, %c8] : memref<8x24xbf16, #tpu.memory_space<vmem>>, vector<8x8xbf16>
    %16 = vector.extract_strided_slice %6 {offsets = [0, 2], sizes = [8, 128], strides = [1, 1]} : vector<8x132xbf16> to vector<8x128xbf16>
    %cst_12 = arith.constant dense<0.000000e+00> : vector<8x128xf32>
    %17 = tpu.matmul %15, %16, %cst_12 {dimension_numbers = #tpu.dot_dimension_numbers<[1], [0], [0], [1], [0, 0, 1, 1], [], []>} : vector<8x8xbf16>, vector<8x128xbf16>, vector<8x128xf32> -> vector<8x128xf32>
    %18 = arith.addf %14, %17 : vector<8x128xf32>
    %c0_13 = arith.constant 0 : index
    %c0_14 = arith.constant 0 : index
    %19 = vector.load %arg6[%c0_13, %c0_14] : memref<8x3xf32, #tpu.memory_space<vmem>>, vector<8x1xf32>
    %20 = vector.broadcast %19 : vector<8x1xf32> to vector<8x128xf32>
    %21 = arith.addf %18, %20 : vector<8x128xf32>
    %cst_15 = arith.constant 0.000000e+00 : f32
    %22 = vector.broadcast %cst_15 : f32 to vector<8x128xf32>
    %23 = arith.cmpf ogt, %21, %22 : vector<8x128xf32>
    %cst_16 = arith.constant 0.00999999977 : f32
    %24 = vector.broadcast %cst_16 : f32 to vector<8x128xf32>
    %25 = arith.mulf %24, %21 : vector<8x128xf32>
    %26 = arith.select %23, %21, %25 : vector<8x128xi1>, vector<8x128xf32>
    %27 = arith.truncf %26 : vector<8x128xf32> to vector<8x128xbf16>
    %c0_17 = arith.constant 0 : index
    %c0_18 = arith.constant 0 : index
    %28 = vector.load %arg9[%c0_17, %c0_18] : memref<8x4xbf16, #tpu.memory_space<vmem>>, vector<8x4xbf16>
    %29 = tpu.concatenate %28, %27 in 1 : vector<8x4xbf16>, vector<8x128xbf16> -> vector<8x132xbf16>
    %30 = vector.extract_strided_slice %29 {offsets = [0, 128], sizes = [8, 4], strides = [1, 1]} : vector<8x132xbf16> to vector<8x4xbf16>
    %c0_19 = arith.constant 0 : index
    %c0_20 = arith.constant 0 : index
    %31 = vector.load %arg9[%c0_19, %c0_20] : memref<8x4xbf16, #tpu.memory_space<vmem>>, vector<8x4xbf16>
    tpu.vector_store %arg9[%c0_19, %c0_20], %30 {strides = array<i32>} : memref<8x4xbf16, #tpu.memory_space<vmem>>, vector<8x4xbf16>,
    %c0_21 = arith.constant 0 : index
    %c16_22 = arith.constant 16 : index
    %32 = vector.load %arg4[%c0_21, %c16_22] : memref<8x24xbf16, #tpu.memory_space<vmem>>, vector<8x8xbf16>
    %cst_23 = arith.constant dense<0.000000e+00> : vector<8x128xf32>
    %33 = tpu.matmul %32, %27, %cst_23 {dimension_numbers = #tpu.dot_dimension_numbers<[1], [0], [0], [1], [0, 0, 1, 1], [], []>} : vector<8x8xbf16>, vector<8x128xbf16>, vector<8x128xf32> -> vector<8x128xf32>
    %c0_24 = arith.constant 0 : index
    %c0_25 = arith.constant 0 : index
    %34 = vector.load %arg4[%c0_24, %c0_25] : memref<8x24xbf16, #tpu.memory_space<vmem>>, vector<8x8xbf16>
    %35 = vector.extract_strided_slice %29 {offsets = [0, 0], sizes = [8, 128], strides = [1, 1]} : vector<8x132xbf16> to vector<8x128xbf16>
    %cst_26 = arith.constant dense<0.000000e+00> : vector<8x128xf32>
    %36 = tpu.matmul %34, %35, %cst_26 {dimension_numbers = #tpu.dot_dimension_numbers<[1], [0], [0], [1], [0, 0, 1, 1], [], []>} : vector<8x8xbf16>, vector<8x128xbf16>, vector<8x128xf32> -> vector<8x128xf32>
    %37 = arith.addf %33, %36 : vector<8x128xf32>
    %c0_27 = arith.constant 0 : index
    %c8_28 = arith.constant 8 : index
    %38 = vector.load %arg4[%c0_27, %c8_28] : memref<8x24xbf16, #tpu.memory_space<vmem>>, vector<8x8xbf16>
    %39 = vector.extract_strided_slice %29 {offsets = [0, 2], sizes = [8, 128], strides = [1, 1]} : vector<8x132xbf16> to vector<8x128xbf16>
    %cst_29 = arith.constant dense<0.000000e+00> : vector<8x128xf32>
    %40 = tpu.matmul %38, %39, %cst_29 {dimension_numbers = #tpu.dot_dimension_numbers<[1], [0], [0], [1], [0, 0, 1, 1], [], []>} : vector<8x8xbf16>, vector<8x128xbf16>, vector<8x128xf32> -> vector<8x128xf32>
    %41 = arith.addf %37, %40 : vector<8x128xf32>
    %c0_30 = arith.constant 0 : index
    %c1 = arith.constant 1 : index
    %42 = vector.load %arg6[%c0_30, %c1] : memref<8x3xf32, #tpu.memory_space<vmem>>, vector<8x1xf32>
    %43 = vector.broadcast %42 : vector<8x1xf32> to vector<8x128xf32>
    %44 = arith.addf %41, %43 : vector<8x128xf32>
    %cst_31 = arith.constant 0.000000e+00 : f32
    %45 = vector.broadcast %cst_31 : f32 to vector<8x128xf32>
    %46 = arith.cmpf ogt, %44, %45 : vector<8x128xf32>
    %cst_32 = arith.constant 0.00999999977 : f32
    %47 = vector.broadcast %cst_32 : f32 to vector<8x128xf32>
    %48 = arith.mulf %47, %44 : vector<8x128xf32>
    %49 = arith.select %46, %44, %48 : vector<8x128xi1>, vector<8x128xf32>
    %c0_33 = arith.constant 0 : index
    %c0_34 = arith.constant 0 : index
    %50 = vector.load %arg5[%c0_33, %c0_34] : memref<8x8xbf16, #tpu.memory_space<vmem>>, vector<8x8xbf16>
    %cst_35 = arith.constant dense<0.000000e+00> : vector<8x128xf32>
    %51 = tpu.matmul %50, %1, %cst_35 {dimension_numbers = #tpu.dot_dimension_numbers<[1], [0], [0], [1], [0, 0, 1, 1], [], []>} : vector<8x8xbf16>, vector<8x128xbf16>, vector<8x128xf32> -> vector<8x128xf32>
    %c0_36 = arith.constant 0 : index
    %c2 = arith.constant 2 : index
    %52 = vector.load %arg6[%c0_36, %c2] : memref<8x3xf32, #tpu.memory_space<vmem>>, vector<8x1xf32>
    %53 = vector.broadcast %52 : vector<8x1xf32> to vector<8x128xf32>
    %54 = arith.addf %51, %53 : vector<8x128xf32>
    %55 = arith.addf %49, %54 : vector<8x128xf32>
    %cst_37 = arith.constant 0.000000e+00 : f32
    %56 = vector.broadcast %cst_37 : f32 to vector<8x128xf32>
    %57 = arith.cmpf ogt, %55, %56 : vector<8x128xf32>
    %cst_38 = arith.constant 0.00999999977 : f32
    %58 = vector.broadcast %cst_38 : f32 to vector<8x128xf32>
    %59 = arith.mulf %58, %55 : vector<8x128xf32>
    %60 = arith.select %57, %55, %59 : vector<8x128xi1>, vector<8x128xf32>
    %c0_39 = arith.constant 0 : index
    %c0_40 = arith.constant 0 : index
    %c0_41 = arith.constant 0 : index
    %61 = vector.load %arg7[%c0_39, %c0_40, %c0_41] : memref<1x8x128xf32, #tpu.memory_space<vmem>>, vector<1x8x128xf32>
    %62 = vector.shape_cast %61 : vector<1x8x128xf32> to vector<8x128xf32>
    %63 = vector.shape_cast %60 : vector<8x128xf32> to vector<1x8x128xf32>
    tpu.vector_store %arg7[%c0_39, %c0_40, %c0_41], %63 {strides = array<i32>} : memref<1x8x128xf32, #tpu.memory_space<vmem>>, vector<1x8x128xf32>,
    return
  }
  func.func @transform_0(%arg0: i32, %arg1: i32) -> (i32, i32, i32) {
    %c0_i32 = arith.constant 0 : i32
    %c0_i32_0 = arith.constant 0 : i32
    return %arg0, %c0_i32, %arg1 : i32, i32, i32
  }
  func.func @transform_1(%arg0: i32, %arg1: i32) -> (i32, i32) {
    %c0_i32 = arith.constant 0 : i32
    %c0_i32_0 = arith.constant 0 : i32
    %c0_i32_1 = arith.constant 0 : i32
    return %c0_i32, %c0_i32_0 : i32, i32
  }
  func.func @transform_2(%arg0: i32, %arg1: i32) -> (i32, i32) {
    %c0_i32 = arith.constant 0 : i32
    %c0_i32_0 = arith.constant 0 : i32
    %c0_i32_1 = arith.constant 0 : i32
    return %c0_i32, %c0_i32_0 : i32, i32
  }
  func.func @transform_3(%arg0: i32, %arg1: i32) -> (i32, i32) {
    %c0_i32 = arith.constant 0 : i32
    %c0_i32_0 = arith.constant 0 : i32
    %c0_i32_1 = arith.constant 0 : i32
    return %c0_i32, %c0_i32_0 : i32, i32
  }
  func.func @transform_4(%arg0: i32, %arg1: i32) -> (i32, i32) {
    %c0_i32 = arith.constant 0 : i32
    %c0_i32_0 = arith.constant 0 : i32
    %c0_i32_1 = arith.constant 0 : i32
    return %c0_i32, %c0_i32_0 : i32, i32
  }
  func.func @transform_5(%arg0: i32, %arg1: i32) -> (i32, i32, i32) {
    %c0_i32 = arith.constant 0 : i32
    %c0_i32_0 = arith.constant 0 : i32
    return %arg0, %c0_i32, %arg1 : i32, i32, i32
  }
}

</mosaic_0001>

<llo_original>
// kernel: tpu_custom_call.1
$region0: #{tpu_custom_call.1}
  #allocation0 [shape = 'u32[]', space=smem, size = 0x4, offset = 0x4, fixed_abs, tag = 'smem constant byte address 0x4 - core index']
  #allocation1 [shape = 'u32[72,128]{1,0:T(1,128)}', space=vmem, size = 0x9000, scoped, tag = 'internal scratch']
  #allocation2 [shape = 'bf16[8,4]{1,0:T(8,128)(2,1)}', space=vmem, size = 0x800, scoped, tag = 'scratch operand']
  #allocation3 [shape = 'bf16[8,4]{1,0:T(8,128)(2,1)}', space=vmem, size = 0x800, scoped, tag = 'scratch operand']
  %s0 = inlined_call_operand.hbm [shape: bf16[2,8,256], index: 0, kind: input, shape index: {}]
  %s1 = inlined_call_operand.vmem [shape: bf16[8,24], index: 1, kind: input, shape index: {}]
  %s2 = inlined_call_operand.vmem [shape: bf16[8,24], index: 2, kind: input, shape index: {}]
  %s3 = inlined_call_operand.vmem [shape: bf16[8,8], index: 3, kind: input, shape index: {}]
  %s4 = inlined_call_operand.vmem [shape: f32[8,3], index: 4, kind: input, shape index: {}]
  %s5 = inlined_call_operand.hbm [shape: f32[2,8,256], index: 5, kind: output, shape index: {}]
  %s6 = sld [smem:[#allocation0]]
  $region61: #{tpu_custom_call.1} parent=0
    _
  %s8 = ssub.s32 1, %s6
  %s9 = scalar_select 0, %s8, %s6
  $region1: #{tpu_custom_call.1} parent=0
    #allocation4 [shape = 'u8[4096]{0}', space=vmem, size = 0x1000, scoped, tag = 'input window, operand 0']
    #allocation5 [shape = 's32[2]{0}', space=sflag, size = 0x8, scoped, tag = 'scoped memory for tpu_custom_call.1']
    #allocation6 [shape = 's32[2]{0}', space=sflag, size = 0x8, scoped, tag = 'scoped memory for tpu_custom_call.1']
    #allocation7 [shape = 'u8[8192]{0}', space=vmem, size = 0x2000, scoped, tag = 'output window, operand 0']
    %10 = vsyncpa [#allocation5], 0
    %s11 = scalar_lea.sflag [#allocation5], 1
    %12 = vsyncpa %s11, 0
    %13 = vsyncpa [#allocation6], 0
    %s14 = scalar_lea.sflag [#allocation6], 1
    %15 = vsyncpa %s14, 0
    loop: start=0, step=1, limit=6
    $region2: #{tpu_custom_call.1} parent=1 // loop_pre_header
      _
    $region3: #{tpu_custom_call.1} parent=1 // loop_header
      %s17 = sphi 0, %s21
      %p18 = scmp.ge.s32.totalorder %s17, 6
      %s24 = sphi 0, %s36
      %s25 = sphi 0, %s32
      %s26 = sphi 0, %s24
      %s27 = sphi 0, %s25
      %s28 = sphi 0, %s26
      %s29 = sphi 0, %s27
      %s41 = sphi 0, %s43
      %s44 = sphi 0, %s41
      %s45 = sphi 0, %s44
      %s61 = sphi 0, %s45
      %s65 = sphi 0, %s65
      %s67 = sphi 0, %s65
      %s68 = sphi 0, %s67
      %s82 = sphi 0, %s68
      %s86 = sphi 0, %s86
      %s88 = sphi 0, %s86
      %s89 = sphi 0, %s88
      %s103 = sphi 0, %s89
      %s107 = sphi 0, %s107
      %s109 = sphi 0, %s107
      %s110 = sphi 0, %s109
      %s124 = sphi 0, %s110
      %s128 = sphi 0, %s128
      %s130 = sphi 0, %s128
      %s131 = sphi 0, %s130
      %s145 = sphi 0, %s131
      %s153 = sphi 0, %s155
      %s156 = sphi 0, %s153
      %s157 = sphi 0, %s156
      %s173 = sphi 0, %s157
    $region4: #{tpu_custom_call.1} parent=1 // loop_header_branch
      %20 = sbr.rel (%p18) target = $region8
    $region5: #{tpu_custom_call.1} parent=1 // loop_body
      %s22 = ssub.s32 %s17, 1
      %s23 = ssub.s32 %s17, 2
      %s30 = sadd.s32 1, %s25
      %p31 = scmp.ge.s32.totalorder %s30, 2
      %s32 = scalar_select %p31, 0, %s30
      %s33 = sadd.s32 1, %s24
      %s34 = scalar_select %p31, %s33, %s24
      %p35 = scmp.ge.s32.totalorder %s34, 2
      %s36 = scalar_select %p35, 0, %s34
      %s37 = ssub.s32 %s24, %s36
      %s38 = ssub.s32 %s25, %s32
      %s39 = sor.u32 %s37, %s38
      %p40 = scmp.eq.s32.totalorder %s39, 0
      %s42 = sadd.s32 %s41, 1
      %s43 = scalar_select %p40, %s41, %s42
      %p46 = pneg %p40
      %p47 = scmp.eq.s32.totalorder %s17, 3
      %p48 = por %p46, %p47
      %p49 = scmp.ne.s32.totalorder %s41, %s44
      %p50 = scmp.eq.s32.totalorder %s17, 0
      %p51 = por %p49, %p50
      %p52 = scmp.ne.s32.totalorder %s41, %s44
      %p53 = scmp.eq.s32.totalorder %s22, 3
      %p54 = por %p52, %p53
      %p55 = scmp.ne.s32.totalorder %s44, %s45
      %p56 = scmp.eq.s32.totalorder %s22, 0
      %p57 = por %p55, %p56
      %p58 = scmp.ne.s32.totalorder %s44, %s45
      %p59 = scmp.eq.s32.totalorder %s23, 3
      %p60 = por %p58, %p59
      %p62 = scmp.ne.s32.totalorder %s45, %s61
      %p63 = scmp.eq.s32.totalorder %s23, 0
      %p64 = por %p62, %p63
      %s66 = sadd.s32 %s65, 1
      %p69 = scmp.eq.s32.totalorder %s17, 3
      %p70 = scmp.ne.s32.totalorder %s65, %s67
      %p71 = scmp.eq.s32.totalorder %s17, 0
      %p72 = por %p70, %p71
      %p73 = scmp.ne.s32.totalorder %s65, %s67
      %p74 = scmp.eq.s32.totalorder %s22, 3
      %p75 = por %p73, %p74
      %p76 = scmp.ne.s32.totalorder %s67, %s68
      %p77 = scmp.eq.s32.totalorder %s22, 0
      %p78 = por %p76, %p77
      %p79 = scmp.ne.s32.totalorder %s67, %s68
      %p80 = scmp.eq.s32.totalorder %s23, 3
      %p81 = por %p79, %p80
      %p83 = scmp.ne.s32.totalorder %s68, %s82
      %p84 = scmp.eq.s32.totalorder %s23, 0
      %p85 = por %p83, %p84
      %s87 = sadd.s32 %s86, 1
      %p90 = scmp.eq.s32.totalorder %s17, 3
      %p91 = scmp.ne.s32.totalorder %s86, %s88
      %p92 = scmp.eq.s32.totalorder %s17, 0
      %p93 = por %p91, %p92
      %p94 = scmp.ne.s32.totalorder %s86, %s88
      %p95 = scmp.eq.s32.totalorder %s22, 3
      %p96 = por %p94, %p95
      %p97 = scmp.ne.s32.totalorder %s88, %s89
      %p98 = scmp.eq.s32.totalorder %s22, 0
      %p99 = por %p97, %p98
      %p100 = scmp.ne.s32.totalorder %s88, %s89
      %p101 = scmp.eq.s32.totalorder %s23, 3
      %p102 = por %p100, %p101
      %p104 = scmp.ne.s32.totalorder %s89, %s103
      %p105 = scmp.eq.s32.totalorder %s23, 0
      %p106 = por %p104, %p105
      %s108 = sadd.s32 %s107, 1
      %p111 = scmp.eq.s32.totalorder %s17, 3
      %p112 = scmp.ne.s32.totalorder %s107, %s109
      %p113 = scmp.eq.s32.totalorder %s17, 0
      %p114 = por %p112, %p113
      %p115 = scmp.ne.s32.totalorder %s107, %s109
      %p116 = scmp.eq.s32.totalorder %s22, 3
      %p117 = por %p115, %p116
      %p118 = scmp.ne.s32.totalorder %s109, %s110
      %p119 = scmp.eq.s32.totalorder %s22, 0
      %p120 = por %p118, %p119
      %p121 = scmp.ne.s32.totalorder %s109, %s110
      %p122 = scmp.eq.s32.totalorder %s23, 3
      %p123 = por %p121, %p122
      %p125 = scmp.ne.s32.totalorder %s110, %s124
      %p126 = scmp.eq.s32.totalorder %s23, 0
      %p127 = por %p125, %p126
      %s129 = sadd.s32 %s128, 1
      %p132 = scmp.eq.s32.totalorder %s17, 3
      %p133 = scmp.ne.s32.totalorder %s128, %s130
      %p134 = scmp.eq.s32.totalorder %s17, 0
      %p135 = por %p133, %p134
      %p136 = scmp.ne.s32.totalorder %s128, %s130
      %p137 = scmp.eq.s32.totalorder %s22, 3
      %p138 = por %p136, %p137
      %p139 = scmp.ne.s32.totalorder %s130, %s131
      %p140 = scmp.eq.s32.totalorder %s22, 0
      %p141 = por %p139, %p140
      %p142 = scmp.ne.s32.totalorder %s130, %s131
      %p143 = scmp.eq.s32.totalorder %s23, 3
      %p144 = por %p142, %p143
      %p146 = scmp.ne.s32.totalorder %s131, %s145
      %p147 = scmp.eq.s32.totalorder %s23, 0
      %p148 = por %p146, %p147
      %s149 = ssub.s32 %s24, %s36
      %s150 = ssub.s32 %s25, %s32
      %s151 = sor.u32 %s149, %s150
      %p152 = scmp.eq.s32.totalorder %s151, 0
      %s154 = sadd.s32 %s153, 1
      %s155 = scalar_select %p152, %s153, %s154
      %p158 = pneg %p152
      %p159 = scmp.eq.s32.totalorder %s17, 3
      %p160 = por %p158, %p159
      %p161 = scmp.ne.s32.totalorder %s153, %s156
      %p162 = scmp.eq.s32.totalorder %s17, 0
      %p163 = por %p161, %p162
      %p164 = scmp.ne.s32.totalorder %s153, %s156
      %p165 = scmp.eq.s32.totalorder %s22, 3
      %p166 = por %p164, %p165
      %p167 = scmp.ne.s32.totalorder %s156, %s157
      %p168 = scmp.eq.s32.totalorder %s22, 0
      %p169 = por %p167, %p168
      %p170 = scmp.ne.s32.totalorder %s156, %s157
      %p171 = scmp.eq.s32.totalorder %s23, 3
      %p172 = por %p170, %p171
      %p174 = scmp.ne.s32.totalorder %s157, %s173
      %p175 = scmp.eq.s32.totalorder %s23, 0
      %p176 = por %p174, %p175
      %p177 = scmp.le.s32.totalorder 1, %s17
      %p178 = scmp.lt.s32.totalorder %s17, 5
      %p179 = pnand %p177, %p178
      %p180 = pneg %p179
      // Predicated region
      $region9: #{tpu_custom_call.1} parent=5 // pred_check
        _
      $region10: #{tpu_custom_call.1} parent=5 // pred_check_branch
        %182 = sbr.rel (%p179) target = $region12
      $region11: #{tpu_custom_call.1} parent=5 // pred_region
        %s183 = ssub.s32 %s17, 1
        // Predicated region
        $region13: #{tpu_custom_call.1} parent=11 // pred_check
          %p184 = pneg %p78
        $region14: #{tpu_custom_call.1} parent=11 // pred_check_branch
          %186 = sbr.rel (%p184) target = $region16
        $region15: #{tpu_custom_call.1} parent=11 // pred_region
          _
        $region16: #{tpu_custom_call.1} parent=11 // pred_fallthru
          _
        // Predicated region
        $region17: #{tpu_custom_call.1} parent=11 // pred_check
          %p187 = pneg %p99
        $region18: #{tpu_custom_call.1} parent=11 // pred_check_branch
          %189 = sbr.rel (%p187) target = $region20
        $region19: #{tpu_custom_call.1} parent=11 // pred_region
          _
        $region20: #{tpu_custom_call.1} parent=11 // pred_fallthru
          _
        // Predicated region
        $region21: #{tpu_custom_call.1} parent=11 // pred_check
          %p190 = pneg %p120
        $region22: #{tpu_custom_call.1} parent=11 // pred_check_branch
          %192 = sbr.rel (%p190) target = $region24
        $region23: #{tpu_custom_call.1} parent=11 // pred_region
          _
        $region24: #{tpu_custom_call.1} parent=11 // pred_fallthru
          _
        // Predicated region
        $region25: #{tpu_custom_call.1} parent=11 // pred_check
          %p193 = pneg %p141
        $region26: #{tpu_custom_call.1} parent=11 // pred_check_branch
          %195 = sbr.rel (%p193) target = $region28
        $region27: #{tpu_custom_call.1} parent=11 // pred_region
          _
        $region28: #{tpu_custom_call.1} parent=11 // pred_fallthru
          _
      $region12: #{tpu_custom_call.1} parent=5 // pred_fallthru
        _
      %p196 = scmp.lt.s32.totalorder %s17, 4
      // Predicated region
      $region29: #{tpu_custom_call.1} parent=5 // pred_check
        %p197 = pneg %p196
      $region30: #{tpu_custom_call.1} parent=5 // pred_check_branch
        %199 = sbr.rel (%p197) target = $region32
      $region31: #{tpu_custom_call.1} parent=5 // pred_region
        // Predicated region
        $region33: #{tpu_custom_call.1} parent=31 // pred_check
          %p200 = pneg %p51
        $region34: #{tpu_custom_call.1} parent=31 // pred_check_branch
          %202 = sbr.rel (%p200) target = $region36
        $region35: #{tpu_custom_call.1} parent=31 // pred_region
          %s203 = sand.u32 %s41, 1
          %s204 = scalar_lea.sflag [#allocation5], %s203
          %s205 = sand.u32 %s41, 1
          %s206 = smul.addr %s205, 4
          %s207 = scalar_lea.vmem [#allocation4], %s206
          %209 = vsyncadd %s204, 0
          %s210 = smul.addr %s24, 2
          %s211 = sadd.s32 %s25, %s210
          %s212 = smul.addr %s211, 4
          %s213 = scalar_lea.hbm %s0, %s212
          %s215 = sshll.u32 %s213, 4
          %s216 = int_to_ptr.hbm [resolvable:$true] %s215
          %s217 = sshll.u32 %s207, 4
          %s218 = int_to_ptr.vmem [resolvable:$true] %s217
          %220 = dma.hbm_to_vmem [thread:$0]  %s216, 64, %s218, %s204
        $region36: #{tpu_custom_call.1} parent=31 // pred_fallthru
          _
      $region32: #{tpu_custom_call.1} parent=5 // pred_fallthru
        _
      %p221 = scmp.le.s32.totalorder 1, %s17
      %p222 = scmp.lt.s32.totalorder %s17, 5
      %p223 = pnand %p221, %p222
      %p224 = pneg %p223
      // Predicated region
      $region37: #{tpu_custom_call.1} parent=5 // pred_check
        _
      $region38: #{tpu_custom_call.1} parent=5 // pred_check_branch
        %226 = sbr.rel (%p223) target = $region40
      $region39: #{tpu_custom_call.1} parent=5 // pred_region
        %s227 = ssub.s32 %s17, 1
        %s228 = sand.u32 %s44, 1
        %s229 = scalar_lea.sflag [#allocation5], %s228
        %s230 = sand.u32 %s44, 1
        %s231 = smul.addr %s230, 4
        %s232 = scalar_lea.vmem [#allocation4], %s231
        // Predicated region
        $region41: #{tpu_custom_call.1} parent=39 // pred_check
          %p233 = pneg %p57
        $region42: #{tpu_custom_call.1} parent=39 // pred_check_branch
          %235 = sbr.rel (%p233) target = $region44
        $region43: #{tpu_custom_call.1} parent=39 // pred_region
          %237 = dma.done %s229, 64
        $region44: #{tpu_custom_call.1} parent=39 // pred_fallthru
          _
        %s238 = sand.u32 %s44, 1
        %s239 = scalar_lea.sflag [#allocation5], %s238
        %s240 = sand.u32 %s44, 1
        %s241 = smul.addr %s240, 4
        %s242 = scalar_lea.vmem [#allocation4], %s241
        %p243 = pneg %p57
        %p244 = pneg %p54
        %p245 = pneg %p78
        %p246 = pneg %p75
        %p247 = pneg %p99
        %p248 = pneg %p96
        %p249 = pneg %p120
        %p250 = pneg %p117
        %p251 = pneg %p141
        %p252 = pneg %p138
        %p253 = pneg %p169
        %p254 = pneg %p166
        %s255 = sand.u32 %s156, 1
        %s256 = scalar_lea.sflag [#allocation6], %s255
        %s257 = sand.u32 %s156, 1
        %s258 = smul.addr %s257, 8
        %s259 = scalar_lea.vmem [#allocation7], %s258
        %v261 = vld [vmem:[%s232] sm:$0xf]
        %p262 = scmp.eq.s32.totalorder %s27, 0
        // Predicated region
        $region45: #{tpu_custom_call.1} parent=39 // pred_check
          %p263 = pneg %p262
        $region46: #{tpu_custom_call.1} parent=39 // pred_check_branch
          %265 = sbr.rel (%p263) target = $region48
        $region47: #{tpu_custom_call.1} parent=39 // pred_region
          %vm266 = vcmask 27648
          %267 = vst.msk [vmem:[#allocation2] sm:$0xf] %vm266, 0
          %268 = vst.msk [vmem:[#allocation3] sm:$0xf] %vm266, 0
        $region48: #{tpu_custom_call.1} parent=39 // pred_fallthru
          _
        %v269 = vld [vmem:[#allocation2] sm:$0xf]
        %v271 = vunpack.c.l.b16 %v261
        %v272 = vpack.c.b16 %v271, %v271
        %273 = vrot.lane.b32.xlu0 %v272, 4
        %v274 = vpop.permute.xlu0 %273
        %vm276 = vcmask 31744
        %v279 = vsel %vm276, %v269, %v274
        %vm280 = vcmask 27648
        %281 = vst.msk [vmem:[#allocation2] sm:$0xf] %vm280, %v274
        %v282 = vld [vmem:[%s1] sm:$0xf]
        %vm283 = vcmask 64512
        %v285 = vsel %vm283, %v282, 0
        %vm287 = vcmask 1043456
        %v288 = vsel %vm287, %v279, 0
        %290 = vmatpush.bf16.msra.mxu0 0
        %291 = vmatpush.bf16.msra.mxu0 0
        %292 = vmatpush.bf16.msra.mxu0 0
        %293 = vmatpush.bf16.msra.mxu0 0
        %294 = vmatpush.bf16.msra.mxu0 0
        %295 = vmatpush.bf16.msra.mxu0 0
        %296 = vmatpush.bf16.msra.mxu0 0
        %297 = vmatpush.bf16.msra.mxu0 %v288
        %298 = vmatmul.bf16.gmra.mxu0 %v285
        %v299 = vpop.f32.mrf.mxu0
        %v300 = vadd.f32 0.0, %v299
        %v301 = vpop.f32.mrf.mxu0
        %302 = vdwg.mxu0
        %v304 = vunpack.c.l.b16 %v282
        %v305 = vpack.c.b16 %v304, %v304
        %306 = vrot.lane.b32.xlu0 %v305, 112
        %v307 = vpop.permute.xlu0 %306
        %v309 = vsel %vm283, %v307, 0
        %v312 = vsel %vm287, %v261, 0
        %314 = vmatpush.bf16.msra.mxu0 0
        %315 = vmatpush.bf16.msra.mxu0 0
        %316 = vmatpush.bf16.msra.mxu0 0
        %317 = vmatpush.bf16.msra.mxu0 0
        %318 = vmatpush.bf16.msra.mxu0 0
        %319 = vmatpush.bf16.msra.mxu0 0
        %320 = vmatpush.bf16.msra.mxu0 0
        %321 = vmatpush.bf16.msra.mxu0 %v312
        %322 = vmatmul.bf16.gmra.mxu0 %v309
        %v323 = vpop.f32.mrf.mxu0
        %v324 = vadd.f32 %v300, %v323
        %v325 = vpop.f32.mrf.mxu0
        %326 = vdwg.mxu0
        %327 = vrot.lane.b32.xlu0 %v305, 120
        %v328 = vpop.permute.xlu0 %327
        %330 = vrot.lane.b32.xlu0 %v279, 126
        %v331 = vpop.permute.xlu0 %330
        %332 = vrot.lane.b32.xlu0 %v274, 126
        %v333 = vpop.permute.xlu0 %332
        %vm334 = vcmask 1031168
        %v335 = vsel %vm334, %v331, %v333
        %v337 = vsel %vm283, %v328, 0
        %v340 = vsel %vm287, %v335, 0
        %342 = vmatpush.bf16.msra.mxu0 0
        %343 = vmatpush.bf16.msra.mxu0 0
        %344 = vmatpush.bf16.msra.mxu0 0
        %345 = vmatpush.bf16.msra.mxu0 0
        %346 = vmatpush.bf16.msra.mxu0 0
        %347 = vmatpush.bf16.msra.mxu0 0
        %348 = vmatpush.bf16.msra.mxu0 0
        %349 = vmatpush.bf16.msra.mxu0 %v340
        %350 = vmatmul.bf16.gmra.mxu0 %v337
        %v351 = vpop.f32.mrf.mxu0
        %v352 = vadd.f32 0.0, %v351
        %v353 = vpop.f32.mrf.mxu0
        %354 = vdwg.mxu0
        %v355 = vadd.f32 %v324, %v352
        %v356 = vld [vmem:[%s4] sm:$0xff]
        %358 = vset.pattern.permute.xlu0 0
        %359 = vperm.xlu0 %358, %v356
        %v360 = vpop.permute.xlu0 %359
        %v362 = vadd.f32 %v355, %v360
        %vm363 = vcmp.gt.f32.partialorder %v362, 0.0
        %v364 = vmul.f32 %v362, 0.01
        %v365 = vsel %vm363, %v362, %v364
        %v366 = vpack.c.bf16 %v365, %v365
        %v367 = vld [vmem:[#allocation3] sm:$0xf]
        %v369 = vunpack.c.l.b16 %v366
        %v370 = vpack.c.b16 %v369, %v369
        %371 = vrot.lane.b32.xlu0 %v370, 4
        %v372 = vpop.permute.xlu0 %371
        %v376 = vsel %vm276, %v367, %v372
        %377 = vst.msk [vmem:[#allocation3] sm:$0xf] %vm280, %v372
        %v378 = vld [vmem:[%s2] sm:$0xf]
        %v380 = vsel %vm283, %v378, 0
        %v382 = vsel %vm287, %v376, 0
        %384 = vmatpush.bf16.msra.mxu0 0
        %385 = vmatpush.bf16.msra.mxu0 0
        %386 = vmatpush.bf16.msra.mxu0 0
        %387 = vmatpush.bf16.msra.mxu0 0
        %388 = vmatpush.bf16.msra.mxu0 0
        %389 = vmatpush.bf16.msra.mxu0 0
        %390 = vmatpush.bf16.msra.mxu0 0
        %391 = vmatpush.bf16.msra.mxu0 %v382
        %392 = vmatmul.bf16.gmra.mxu0 %v380
        %v393 = vpop.f32.mrf.mxu0
        %v394 = vadd.f32 0.0, %v393
        %v395 = vpop.f32.mrf.mxu0
        %396 = vdwg.mxu0
        %v398 = vunpack.c.l.b16 %v378
        %v399 = vpack.c.b16 %v398, %v398
        %400 = vrot.lane.b32.xlu0 %v399, 112
        %v401 = vpop.permute.xlu0 %400
        %v403 = vsel %vm283, %v401, 0
        %v406 = vsel %vm287, %v366, 0
        %408 = vmatpush.bf16.msra.mxu0 0
        %409 = vmatpush.bf16.msra.mxu0 0
        %410 = vmatpush.bf16.msra.mxu0 0
        %411 = vmatpush.bf16.msra.mxu0 0
        %412 = vmatpush.bf16.msra.mxu0 0
        %413 = vmatpush.bf16.msra.mxu0 0
        %414 = vmatpush.bf16.msra.mxu0 0
        %415 = vmatpush.bf16.msra.mxu0 %v406
        %416 = vmatmul.bf16.gmra.mxu0 %v403
        %v417 = vpop.f32.mrf.mxu0
        %v418 = vadd.f32 %v394, %v417
        %v419 = vpop.f32.mrf.mxu0
        %420 = vdwg.mxu0
        %421 = vrot.lane.b32.xlu0 %v399, 120
        %v422 = vpop.permute.xlu0 %421
        %424 = vrot.lane.b32.xlu0 %v376, 126
        %v425 = vpop.permute.xlu0 %424
        %426 = vrot.lane.b32.xlu0 %v372, 126
        %v427 = vpop.permute.xlu0 %426
        %v428 = vsel %vm334, %v425, %v427
        %v430 = vsel %vm283, %v422, 0
        %v433 = vsel %vm287, %v428, 0
        %435 = vmatpush.bf16.msra.mxu0 0
        %436 = vmatpush.bf16.msra.mxu0 0
        %437 = vmatpush.bf16.msra.mxu0 0
        %438 = vmatpush.bf16.msra.mxu0 0
        %439 = vmatpush.bf16.msra.mxu0 0
        %440 = vmatpush.bf16.msra.mxu0 0
        %441 = vmatpush.bf16.msra.mxu0 0
        %442 = vmatpush.bf16.msra.mxu0 %v433
        %443 = vmatmul.bf16.gmra.mxu0 %v430
        %v444 = vpop.f32.mrf.mxu0
        %v445 = vadd.f32 0.0, %v444
        %v446 = vpop.f32.mrf.mxu0
        %447 = vdwg.mxu0
        %v448 = vadd.f32 %v418, %v445
        %v449 = vld [vmem:[%s4] sm:$0xff]
        %451 = vset.pattern.permute.xlu0 1
        %452 = vperm.xlu0 %451, %v449
        %v453 = vpop.permute.xlu0 %452
        %v455 = vadd.f32 %v448, %v453
        %vm456 = vcmp.gt.f32.partialorder %v455, 0.0
        %v457 = vmul.f32 %v455, 0.01
        %v458 = vsel %vm456, %v455, %v457
        %v459 = vld [vmem:[%s3] sm:$0xf]
        %460 = vset.pattern.permute.xlu0 2
        %461 = vperm.xlu0 %460, %v449
        %v462 = vpop.permute.xlu0 %461
        %v465 = vsel %vm283, %v459, 0
        %467 = vmatpush.bf16.msra.mxu0 0
        %468 = vmatpush.bf16.msra.mxu0 0
        %469 = vmatpush.bf16.msra.mxu0 0
        %470 = vmatpush.bf16.msra.mxu0 0
        %471 = vmatpush.bf16.msra.mxu0 0
        %472 = vmatpush.bf16.msra.mxu0 0
        %473 = vmatpush.bf16.msra.mxu0 0
        %474 = vmatpush.bf16.msra.mxu0 %v312
        %475 = vmatmul.bf16.gmra.mxu0 %v465
        %v476 = vpop.f32.mrf.mxu0
        %v477 = vadd.f32 %v462, %v476
        %v478 = vpop.f32.mrf.mxu0
        %479 = vdwg.mxu0
        %v480 = vadd.f32 %v458, %v477
        %vm481 = vcmp.gt.f32.partialorder %v480, 0.0
        %v482 = vmul.f32 %v480, 0.01
        %v483 = vsel %vm481, %v480, %v482
        %484 = vst [vmem:[%s259] sm:$0xff] %v483
        %s485 = sand.u32 %s156, 1
        %s486 = scalar_lea.sflag [#allocation6], %s485
        %s487 = sand.u32 %s156, 1
        %s488 = smul.addr %s487, 8
        %s489 = scalar_lea.vmem [#allocation7], %s488
        // Predicated region
        $region49: #{tpu_custom_call.1} parent=39 // pred_check
          %p490 = pneg %p166
        $region50: #{tpu_custom_call.1} parent=39 // pred_check_branch
          %492 = sbr.rel (%p490) target = $region52
        $region51: #{tpu_custom_call.1} parent=39 // pred_region
          %494 = vsyncadd %s486, 0
          %s495 = smul.addr %s26, 2
          %s496 = sadd.s32 %s27, %s495
          %s497 = smul.addr %s496, 8
          %s498 = scalar_lea.hbm %s5, %s497
          %s500 = sshll.u32 %s489, 4
          %s501 = int_to_ptr.vmem [resolvable:$true] %s500
          %s502 = sshll.u32 %s498, 4
          %s503 = int_to_ptr.hbm [resolvable:$true] %s502
          %505 = dma.vmem_to_hbm [thread:$0]  %s501, 128, %s503, %s486
        $region52: #{tpu_custom_call.1} parent=39 // pred_fallthru
          _
      $region40: #{tpu_custom_call.1} parent=5 // pred_fallthru
        _
      %p506 = scmp.le.s32.totalorder 2, %s17
      // Predicated region
      $region53: #{tpu_custom_call.1} parent=5 // pred_check
        %p507 = pneg %p506
      $region54: #{tpu_custom_call.1} parent=5 // pred_check_branch
        %509 = sbr.rel (%p507) target = $region56
      $region55: #{tpu_custom_call.1} parent=5 // pred_region
        %s510 = ssub.s32 %s17, 2
        // Predicated region
        $region57: #{tpu_custom_call.1} parent=55 // pred_check
          %p511 = pneg %p172
        $region58: #{tpu_custom_call.1} parent=55 // pred_check_branch
          %513 = sbr.rel (%p511) target = $region60
        $region59: #{tpu_custom_call.1} parent=55 // pred_region
          %s514 = sand.u32 %s157, 1
          %s515 = scalar_lea.sflag [#allocation6], %s514
          %s516 = sand.u32 %s157, 1
          %s517 = smul.addr %s516, 8
          %s518 = scalar_lea.vmem [#allocation7], %s517
          %520 = dma.done %s515, 128
        $region60: #{tpu_custom_call.1} parent=55 // pred_fallthru
          _
      $region56: #{tpu_custom_call.1} parent=5 // pred_fallthru
        _
    $region6: #{tpu_custom_call.1} parent=1 // loop_footer
      %s21 = sadd.s32 1, %s17
    $region7: #{tpu_custom_call.1} parent=1 // loop_footer_branch
      %16 = sbr.rel target = $region3
    $region8: #{tpu_custom_call.1} parent=1 // loop_exit
      _
    %521 = vsyncpa [#allocation5], 1
    %s522 = scalar_lea.sflag [#allocation5], 1
    %523 = vsyncpa %s522, 1
    %524 = vsyncpa [#allocation6], 1
    %s525 = scalar_lea.sflag [#allocation6], 1
    %526 = vsyncpa %s525, 1

// kernel: tpu_custom_call.1
$region0: #{tpu_custom_call.1}
  #allocation0 [shape = 'u32[]', space=smem, size = 0x4, offset = 0x4, fixed_abs, tag = 'smem constant byte address 0x4 - core index']
  #allocation1 [shape = 'u32[72,128]{1,0:T(1,128)}', space=vmem, size = 0x9000, scoped, tag = 'internal scratch']
  #allocation2 [shape = 'bf16[8,4]{1,0:T(8,128)(2,1)}', space=vmem, size = 0x800, scoped, tag = 'scratch operand']
  #allocation3 [shape = 'bf16[8,4]{1,0:T(8,128)(2,1)}', space=vmem, size = 0x800, scoped, tag = 'scratch operand']
  %s0 = inlined_call_operand.hbm [shape: bf16[2,8,256], index: 0, kind: input, shape index: {}]
  %s1 = inlined_call_operand.vmem [shape: bf16[8,24], index: 1, kind: input, shape index: {}]
  %s2 = inlined_call_operand.vmem [shape: bf16[8,24], index: 2, kind: input, shape index: {}]
  %s3 = inlined_call_operand.vmem [shape: bf16[8,8], index: 3, kind: input, shape index: {}]
  %s4 = inlined_call_operand.vmem [shape: f32[8,3], index: 4, kind: input, shape index: {}]
  %s5 = inlined_call_operand.hbm [shape: f32[2,8,256], index: 5, kind: output, shape index: {}]
  %s6 = sld [smem:[#allocation0]]
  $region61: #{tpu_custom_call.1} parent=0
    _
  %s8 = ssub.s32 1, %s6
  %s9 = scalar_select 0, %s8, %s6
  $region1: #{tpu_custom_call.1} parent=0
    #allocation4 [shape = 'u8[4096]{0}', space=vmem, size = 0x1000, scoped, tag = 'input window, operand 0']
    #allocation5 [shape = 's32[2]{0}', space=sflag, size = 0x8, scoped, tag = 'scoped memory for tpu_custom_call.1']
    #allocation6 [shape = 's32[2]{0}', space=sflag, size = 0x8, scoped, tag = 'scoped memory for tpu_custom_call.1']
    #allocation7 [shape = 'u8[8192]{0}', space=vmem, size = 0x2000, scoped, tag = 'output window, operand 0']
    %10 = vsyncpa [#allocation5], 0
    %s11 = scalar_lea.sflag [#allocation5], 1
    %12 = vsyncpa %s11, 0
    %13 = vsyncpa [#allocation6], 0
    %s14 = scalar_lea.sflag [#allocation6], 1
    %15 = vsyncpa %s14, 0
    loop: start=0, step=1, limit=6
    $region2: #{tpu_custom_call.1} parent=1 // loop_pre_header
      _
    $region3: #{tpu_custom_call.1} parent=1 // loop_header
      %s17 = sphi 0, %s21
      %p18 = scmp.ge.s32.totalorder %s17, 6
      %s24 = sphi 0, %s36
      %s25 = sphi 0, %s32
      %s26 = sphi 0, %s24
      %s27 = sphi 0, %s25
      %s28 = sphi 0, %s26
      %s29 = sphi 0, %s27
      %s41 = sphi 0, %s43
      %s44 = sphi 0, %s41
      %s45 = sphi 0, %s44
      %s61 = sphi 0, %s45
      %s65 = sphi 0, %s65
      %s67 = sphi 0, %s65
      %s68 = sphi 0, %s67
      %s82 = sphi 0, %s68
      %s86 = sphi 0, %s86
      %s88 = sphi 0, %s86
      %s89 = sphi 0, %s88
      %s103 = sphi 0, %s89
      %s107 = sphi 0, %s107
      %s109 = sphi 0, %s107
      %s110 = sphi 0, %s109
      %s124 = sphi 0, %s110
      %s128 = sphi 0, %s128
      %s130 = sphi 0, %s128
      %s131 = sphi 0, %s130
      %s145 = sphi 0, %s131
      %s153 = sphi 0, %s155
      %s156 = sphi 0, %s153
      %s157 = sphi 0, %s156
      %s173 = sphi 0, %s157
    $region4: #{tpu_custom_call.1} parent=1 // loop_header_branch
      %20 = sbr.rel (%p18) target = $region8
    $region5: #{tpu_custom_call.1} parent=1 // loop_body
      %s22 = ssub.s32 %s17, 1
      %s23 = ssub.s32 %s17, 2
      %s30 = sadd.s32 1, %s25
      %p31 = scmp.ge.s32.totalorder %s30, 2
      %s32 = scalar_select %p31, 0, %s30
      %s33 = sadd.s32 1, %s24
      %s34 = scalar_select %p31, %s33, %s24
      %p35 = scmp.ge.s32.totalorder %s34, 2
      %s36 = scalar_select %p35, 0, %s34
      %s37 = ssub.s32 %s24, %s36
      %s38 = ssub.s32 %s25, %s32
      %s39 = sor.u32 %s37, %s38
      %p40 = scmp.eq.s32.totalorder %s39, 0
      %s42 = sadd.s32 %s41, 1
      %s43 = scalar_select %p40, %s41, %s42
      %p46 = pneg %p40
      %p47 = scmp.eq.s32.totalorder %s17, 3
      %p48 = por %p46, %p47
      %p49 = scmp.ne.s32.totalorder %s41, %s44
      %p50 = scmp.eq.s32.totalorder %s17, 0
      %p51 = por %p49, %p50
      %p52 = scmp.ne.s32.totalorder %s41, %s44
      %p53 = scmp.eq.s32.totalorder %s22, 3
      %p54 = por %p52, %p53
      %p55 = scmp.ne.s32.totalorder %s44, %s45
      %p56 = scmp.eq.s32.totalorder %s22, 0
      %p57 = por %p55, %p56
      %p58 = scmp.ne.s32.totalorder %s44, %s45
      %p59 = scmp.eq.s32.totalorder %s23, 3
      %p60 = por %p58, %p59
      %p62 = scmp.ne.s32.totalorder %s45, %s61
      %p63 = scmp.eq.s32.totalorder %s23, 0
      %p64 = por %p62, %p63
      %s66 = sadd.s32 %s65, 1
      %p69 = scmp.eq.s32.totalorder %s17, 3
      %p70 = scmp.ne.s32.totalorder %s65, %s67
      %p71 = scmp.eq.s32.totalorder %s17, 0
      %p72 = por %p70, %p71
      %p73 = scmp.ne.s32.totalorder %s65, %s67
      %p74 = scmp.eq.s32.totalorder %s22, 3
      %p75 = por %p73, %p74
      %p76 = scmp.ne.s32.totalorder %s67, %s68
      %p77 = scmp.eq.s32.totalorder %s22, 0
      %p78 = por %p76, %p77
      %p79 = scmp.ne.s32.totalorder %s67, %s68
      %p80 = scmp.eq.s32.totalorder %s23, 3
      %p81 = por %p79, %p80
      %p83 = scmp.ne.s32.totalorder %s68, %s82
      %p84 = scmp.eq.s32.totalorder %s23, 0
      %p85 = por %p83, %p84
      %s87 = sadd.s32 %s86, 1
      %p90 = scmp.eq.s32.totalorder %s17, 3
      %p91 = scmp.ne.s32.totalorder %s86, %s88
      %p92 = scmp.eq.s32.totalorder %s17, 0
      %p93 = por %p91, %p92
      %p94 = scmp.ne.s32.totalorder %s86, %s88
      %p95 = scmp.eq.s32.totalorder %s22, 3
      %p96 = por %p94, %p95
      %p97 = scmp.ne.s32.totalorder %s88, %s89
      %p98 = scmp.eq.s32.totalorder %s22, 0
      %p99 = por %p97, %p98
      %p100 = scmp.ne.s32.totalorder %s88, %s89
      %p101 = scmp.eq.s32.totalorder %s23, 3
      %p102 = por %p100, %p101
      %p104 = scmp.ne.s32.totalorder %s89, %s103
      %p105 = scmp.eq.s32.totalorder %s23, 0
      %p106 = por %p104, %p105
      %s108 = sadd.s32 %s107, 1
      %p111 = scmp.eq.s32.totalorder %s17, 3
      %p112 = scmp.ne.s32.totalorder %s107, %s109
      %p113 = scmp.eq.s32.totalorder %s17, 0
      %p114 = por %p112, %p113
      %p115 = scmp.ne.s32.totalorder %s107, %s109
      %p116 = scmp.eq.s32.totalorder %s22, 3
      %p117 = por %p115, %p116
      %p118 = scmp.ne.s32.totalorder %s109, %s110
      %p119 = scmp.eq.s32.totalorder %s22, 0
      %p120 = por %p118, %p119
      %p121 = scmp.ne.s32.totalorder %s109, %s110
      %p122 = scmp.eq.s32.totalorder %s23, 3
      %p123 = por %p121, %p122
      %p125 = scmp.ne.s32.totalorder %s110, %s124
      %p126 = scmp.eq.s32.totalorder %s23, 0
      %p127 = por %p125, %p126
      %s129 = sadd.s32 %s128, 1
      %p132 = scmp.eq.s32.totalorder %s17, 3
      %p133 = scmp.ne.s32.totalorder %s128, %s130
      %p134 = scmp.eq.s32.totalorder %s17, 0
      %p135 = por %p133, %p134
      %p136 = scmp.ne.s32.totalorder %s128, %s130
      %p137 = scmp.eq.s32.totalorder %s22, 3
      %p138 = por %p136, %p137
      %p139 = scmp.ne.s32.totalorder %s130, %s131
      %p140 = scmp.eq.s32.totalorder %s22, 0
      %p141 = por %p139, %p140
      %p142 = scmp.ne.s32.totalorder %s130, %s131
      %p143 = scmp.eq.s32.totalorder %s23, 3
      %p144 = por %p142, %p143
      %p146 = scmp.ne.s32.totalorder %s131, %s145
      %p147 = scmp.eq.s32.totalorder %s23, 0
      %p148 = por %p146, %p147
      %s149 = ssub.s32 %s24, %s36
      %s150 = ssub.s32 %s25, %s32
      %s151 = sor.u32 %s149, %s150
      %p152 = scmp.eq.s32.totalorder %s151, 0
      %s154 = sadd.s32 %s153, 1
      %s155 = scalar_select %p152, %s153, %s154
      %p158 = pneg %p152
      %p159 = scmp.eq.s32.totalorder %s17, 3
      %p160 = por %p158, %p159
      %p161 = scmp.ne.s32.totalorder %s153, %s156
      %p162 = scmp.eq.s32.totalorder %s17, 0
      %p163 = por %p161, %p162
      %p164 = scmp.ne.s32.totalorder %s153, %s156
      %p165 = scmp.eq.s32.totalorder %s22, 3
      %p166 = por %p164, %p165
      %p167 = scmp.ne.s32.totalorder %s156, %s157
      %p168 = scmp.eq.s32.totalorder %s22, 0
      %p169 = por %p167, %p168
      %p170 = scmp.ne.s32.totalorder %s156, %s157
      %p171 = scmp.eq.s32.totalorder %s23, 3
      %p172 = por %p170, %p171
      %p174 = scmp.ne.s32.totalorder %s157, %s173
      %p175 = scmp.eq.s32.totalorder %s23, 0
      %p176 = por %p174, %p175
      %p177 = scmp.le.s32.totalorder 1, %s17
      %p178 = scmp.lt.s32.totalorder %s17, 5
      %p179 = pnand %p177, %p178
      %p180 = pneg %p179
      // Predicated region
      $region9: #{tpu_custom_call.1} parent=5 // pred_check
        _
      $region10: #{tpu_custom_call.1} parent=5 // pred_check_branch
        %182 = sbr.rel (%p179) target = $region12
      $region11: #{tpu_custom_call.1} parent=5 // pred_region
        %s183 = ssub.s32 %s17, 1
        // Predicated region
        $region13: #{tpu_custom_call.1} parent=11 // pred_check
          %p184 = pneg %p78
        $region14: #{tpu_custom_call.1} parent=11 // pred_check_branch
          %186 = sbr.rel (%p184) target = $region16
        $region15: #{tpu_custom_call.1} parent=11 // pred_region
          _
        $region16: #{tpu_custom_call.1} parent=11 // pred_fallthru
          _
        // Predicated region
        $region17: #{tpu_custom_call.1} parent=11 // pred_check
          %p187 = pneg %p99
        $region18: #{tpu_custom_call.1} parent=11 // pred_check_branch
          %189 = sbr.rel (%p187) target = $region20
        $region19: #{tpu_custom_call.1} parent=11 // pred_region
          _
        $region20: #{tpu_custom_call.1} parent=11 // pred_fallthru
          _
        // Predicated region
        $region21: #{tpu_custom_call.1} parent=11 // pred_check
          %p190 = pneg %p120
        $region22: #{tpu_custom_call.1} parent=11 // pred_check_branch
          %192 = sbr.rel (%p190) target = $region24
        $region23: #{tpu_custom_call.1} parent=11 // pred_region
          _
        $region24: #{tpu_custom_call.1} parent=11 // pred_fallthru
          _
        // Predicated region
        $region25: #{tpu_custom_call.1} parent=11 // pred_check
          %p193 = pneg %p141
        $region26: #{tpu_custom_call.1} parent=11 // pred_check_branch
          %195 = sbr.rel (%p193) target = $region28
        $region27: #{tpu_custom_call.1} parent=11 // pred_region
          _
        $region28: #{tpu_custom_call.1} parent=11 // pred_fallthru
          _
      $region12: #{tpu_custom_call.1} parent=5 // pred_fallthru
        _
      %p196 = scmp.lt.s32.totalorder %s17, 4
      // Predicated region
      $region29: #{tpu_custom_call.1} parent=5 // pred_check
        %p197 = pneg %p196
      $region30: #{tpu_custom_call.1} parent=5 // pred_check_branch
        %199 = sbr.rel (%p197) target = $region32
      $region31: #{tpu_custom_call.1} parent=5 // pred_region
        // Predicated region
        $region33: #{tpu_custom_call.1} parent=31 // pred_check
          %p200 = pneg %p51
        $region34: #{tpu_custom_call.1} parent=31 // pred_check_branch
          %202 = sbr.rel (%p200) target = $region36
        $region35: #{tpu_custom_call.1} parent=31 // pred_region
          %s203 = sand.u32 %s41, 1
          %s204 = scalar_lea.sflag [#allocation5], %s203
          %s205 = sand.u32 %s41, 1
          %s206 = smul.addr %s205, 4
          %s207 = scalar_lea.vmem [#allocation4], %s206
          %209 = vsyncadd %s204, 0
          %s210 = smul.addr %s24, 2
          %s211 = sadd.s32 %s25, %s210
          %s212 = smul.addr %s211, 4
          %s213 = scalar_lea.hbm %s0, %s212
          %s215 = sshll.u32 %s213, 4
          %s216 = int_to_ptr.hbm [resolvable:$true] %s215
          %s217 = sshll.u32 %s207, 4
          %s218 = int_to_ptr.vmem [resolvable:$true] %s217
          %220 = dma.hbm_to_vmem [thread:$0]  %s216, 64, %s218, %s204
        $region36: #{tpu_custom_call.1} parent=31 // pred_fallthru
          _
      $region32: #{tpu_custom_call.1} parent=5 // pred_fallthru
        _
      %p221 = scmp.le.s32.totalorder 1, %s17
      %p222 = scmp.lt.s32.totalorder %s17, 5
      %p223 = pnand %p221, %p222
      %p224 = pneg %p223
      // Predicated region
      $region37: #{tpu_custom_call.1} parent=5 // pred_check
        _
      $region38: #{tpu_custom_call.1} parent=5 // pred_check_branch
        %226 = sbr.rel (%p223) target = $region40
      $region39: #{tpu_custom_call.1} parent=5 // pred_region
        %s227 = ssub.s32 %s17, 1
        %s228 = sand.u32 %s44, 1
        %s229 = scalar_lea.sflag [#allocation5], %s228
        %s230 = sand.u32 %s44, 1
        %s231 = smul.addr %s230, 4
        %s232 = scalar_lea.vmem [#allocation4], %s231
        // Predicated region
        $region41: #{tpu_custom_call.1} parent=39 // pred_check
          %p233 = pneg %p57
        $region42: #{tpu_custom_call.1} parent=39 // pred_check_branch
          %235 = sbr.rel (%p233) target = $region44
        $region43: #{tpu_custom_call.1} parent=39 // pred_region
          %237 = dma.done %s229, 64
        $region44: #{tpu_custom_call.1} parent=39 // pred_fallthru
          _
        %s238 = sand.u32 %s44, 1
        %s239 = scalar_lea.sflag [#allocation5], %s238
        %s240 = sand.u32 %s44, 1
        %s241 = smul.addr %s240, 4
        %s242 = scalar_lea.vmem [#allocation4], %s241
        %p243 = pneg %p57
        %p244 = pneg %p54
        %p245 = pneg %p78
        %p246 = pneg %p75
        %p247 = pneg %p99
        %p248 = pneg %p96
        %p249 = pneg %p120
        %p250 = pneg %p117
        %p251 = pneg %p141
        %p252 = pneg %p138
        %p253 = pneg %p169
        %p254 = pneg %p166
        %s255 = sand.u32 %s156, 1
        %s256 = scalar_lea.sflag [#allocation6], %s255
        %s257 = sand.u32 %s156, 1
        %s258 = smul.addr %s257, 8
        %s259 = scalar_lea.vmem [#allocation7], %s258
        %v261 = vld [vmem:[%s232] sm:$0xf]
        %p262 = scmp.eq.s32.totalorder %s27, 0
        // Predicated region
        $region45: #{tpu_custom_call.1} parent=39 // pred_check
          %p263 = pneg %p262
        $region46: #{tpu_custom_call.1} parent=39 // pred_check_branch
          %265 = sbr.rel (%p263) target = $region48
        $region47: #{tpu_custom_call.1} parent=39 // pred_region
          %vm266 = vcmask 27648
          %267 = vst.msk [vmem:[#allocation2] sm:$0xf] %vm266, 0
          %268 = vst.msk [vmem:[#allocation3] sm:$0xf] %vm266, 0
        $region48: #{tpu_custom_call.1} parent=39 // pred_fallthru
          _
        %v269 = vld [vmem:[#allocation2] sm:$0xf]
        %v271 = vunpack.c.l.b16 %v261
        %v272 = vpack.c.b16 %v271, %v271
        %273 = vrot.lane.b32.xlu0 %v272, 4
        %v274 = vpop.permute.xlu0 %273
        %vm276 = vcmask 31744
        %v279 = vsel %vm276, %v269, %v274
        %vm280 = vcmask 27648
        %281 = vst.msk [vmem:[#allocation2] sm:$0xf] %vm280, %v274
        %v282 = vld [vmem:[%s1] sm:$0xf]
        %vm283 = vcmask 64512
        %v285 = vsel %vm283, %v282, 0
        %vm287 = vcmask 1043456
        %v288 = vsel %vm287, %v279, 0
        %290 = vmatpush.bf16.msra.mxu0 0
        %291 = vmatpush.bf16.msra.mxu0 0
        %292 = vmatpush.bf16.msra.mxu0 0
        %293 = vmatpush.bf16.msra.mxu0 0
        %294 = vmatpush.bf16.msra.mxu0 0
        %295 = vmatpush.bf16.msra.mxu0 0
        %296 = vmatpush.bf16.msra.mxu0 0
        %297 = vmatpush.bf16.msra.mxu0 %v288
        %298 = vmatmul.bf16.gmra.mxu0 %v285
        %v299 = vpop.f32.mrf.mxu0
        %v300 = vadd.f32 0.0, %v299
        %v301 = vpop.f32.mrf.mxu0
        %302 = vdwg.mxu0
        %v304 = vunpack.c.l.b16 %v282
        %v305 = vpack.c.b16 %v304, %v304
        %306 = vrot.lane.b32.xlu0 %v305, 112
        %v307 = vpop.permute.xlu0 %306
        %v309 = vsel %vm283, %v307, 0
        %v312 = vsel %vm287, %v261, 0
        %314 = vmatpush.bf16.msra.mxu0 0
        %315 = vmatpush.bf16.msra.mxu0 0
        %316 = vmatpush.bf16.msra.mxu0 0
        %317 = vmatpush.bf16.msra.mxu0 0
        %318 = vmatpush.bf16.msra.mxu0 0
        %319 = vmatpush.bf16.msra.mxu0 0
        %320 = vmatpush.bf16.msra.mxu0 0
        %321 = vmatpush.bf16.msra.mxu0 %v312
        %322 = vmatmul.bf16.gmra.mxu0 %v309
        %v323 = vpop.f32.mrf.mxu0
        %v324 = vadd.f32 %v300, %v323
        %v325 = vpop.f32.mrf.mxu0
        %326 = vdwg.mxu0
        %327 = vrot.lane.b32.xlu0 %v305, 120
        %v328 = vpop.permute.xlu0 %327
        %330 = vrot.lane.b32.xlu0 %v279, 126
        %v331 = vpop.permute.xlu0 %330
        %332 = vrot.lane.b32.xlu0 %v274, 126
        %v333 = vpop.permute.xlu0 %332
        %vm334 = vcmask 1031168
        %v335 = vsel %vm334, %v331, %v333
        %v337 = vsel %vm283, %v328, 0
        %v340 = vsel %vm287, %v335, 0
        %342 = vmatpush.bf16.msra.mxu0 0
        %343 = vmatpush.bf16.msra.mxu0 0
        %344 = vmatpush.bf16.msra.mxu0 0
        %345 = vmatpush.bf16.msra.mxu0 0
        %346 = vmatpush.bf16.msra.mxu0 0
        %347 = vmatpush.bf16.msra.mxu0 0
        %348 = vmatpush.bf16.msra.mxu0 0
        %349 = vmatpush.bf16.msra.mxu0 %v340
        %350 = vmatmul.bf16.gmra.mxu0 %v337
        %v351 = vpop.f32.mrf.mxu0
        %v352 = vadd.f32 0.0, %v351
        %v353 = vpop.f32.mrf.mxu0
        %354 = vdwg.mxu0
        %v355 = vadd.f32 %v324, %v352
        %v356 = vld [vmem:[%s4] sm:$0xff]
        %358 = vset.pattern.permute.xlu0 0
        %359 = vperm.xlu0 %358, %v356
        %v360 = vpop.permute.xlu0 %359
        %v362 = vadd.f32 %v355, %v360
        %vm363 = vcmp.gt.f32.partialorder %v362, 0.0
        %v364 = vmul.f32 %v362, 0.01
        %v365 = vsel %vm363, %v362, %v364
        %v366 = vpack.c.bf16 %v365, %v365
        %v367 = vld [vmem:[#allocation3] sm:$0xf]
        %v369 = vunpack.c.l.b16 %v366
        %v370 = vpack.c.b16 %v369, %v369
        %371 = vrot.lane.b32.xlu0 %v370, 4
        %v372 = vpop.permute.xlu0 %371
        %v376 = vsel %vm276, %v367, %v372
        %377 = vst.msk [vmem:[#allocation3] sm:$0xf] %vm280, %v372
        %v378 = vld [vmem:[%s2] sm:$0xf]
        %v380 = vsel %vm283, %v378, 0
        %v382 = vsel %vm287, %v376, 0
        %384 = vmatpush.bf16.msra.mxu0 0
        %385 = vmatpush.bf16.msra.mxu0 0
        %386 = vmatpush.bf16.msra.mxu0 0
        %387 = vmatpush.bf16.msra.mxu0 0
        %388 = vmatpush.bf16.msra.mxu0 0
        %389 = vmatpush.bf16.msra.mxu0 0
        %390 = vmatpush.bf16.msra.mxu0 0
        %391 = vmatpush.bf16.msra.mxu0 %v382
        %392 = vmatmul.bf16.gmra.mxu0 %v380
        %v393 = vpop.f32.mrf.mxu0
        %v394 = vadd.f32 0.0, %v393
        %v395 = vpop.f32.mrf.mxu0
        %396 = vdwg.mxu0
        %v398 = vunpack.c.l.b16 %v378
        %v399 = vpack.c.b16 %v398, %v398
        %400 = vrot.lane.b32.xlu0 %v399, 112
        %v401 = vpop.permute.xlu0 %400
        %v403 = vsel %vm283, %v401, 0
        %v406 = vsel %vm287, %v366, 0
        %408 = vmatpush.bf16.msra.mxu0 0
        %409 = vmatpush.bf16.msra.mxu0 0
        %410 = vmatpush.bf16.msra.mxu0 0
        %411 = vmatpush.bf16.msra.mxu0 0
        %412 = vmatpush.bf16.msra.mxu0 0
        %413 = vmatpush.bf16.msra.mxu0 0
        %414 = vmatpush.bf16.msra.mxu0 0
        %415 = vmatpush.bf16.msra.mxu0 %v406
        %416 = vmatmul.bf16.gmra.mxu0 %v403
        %v417 = vpop.f32.mrf.mxu0
        %v418 = vadd.f32 %v394, %v417
        %v419 = vpop.f32.mrf.mxu0
        %420 = vdwg.mxu0
        %421 = vrot.lane.b32.xlu0 %v399, 120
        %v422 = vpop.permute.xlu0 %421
        %424 = vrot.lane.b32.xlu0 %v376, 126
        %v425 = vpop.permute.xlu0 %424
        %426 = vrot.lane.b32.xlu0 %v372, 126
        %v427 = vpop.permute.xlu0 %426
        %v428 = vsel %vm334, %v425, %v427
        %v430 = vsel %vm283, %v422, 0
        %v433 = vsel %vm287, %v428, 0
        %435 = vmatpush.bf16.msra.mxu0 0
        %436 = vmatpush.bf16.msra.mxu0 0
        %437 = vmatpush.bf16.msra.mxu0 0
        %438 = vmatpush.bf16.msra.mxu0 0
        %439 = vmatpush.bf16.msra.mxu0 0
        %440 = vmatpush.bf16.msra.mxu0 0
        %441 = vmatpush.bf16.msra.mxu0 0
        %442 = vmatpush.bf16.msra.mxu0 %v433
        %443 = vmatmul.bf16.gmra.mxu0 %v430
        %v444 = vpop.f32.mrf.mxu0
        %v445 = vadd.f32 0.0, %v444
        %v446 = vpop.f32.mrf.mxu0
        %447 = vdwg.mxu0
        %v448 = vadd.f32 %v418, %v445
        %v449 = vld [vmem:[%s4] sm:$0xff]
        %451 = vset.pattern.permute.xlu0 1
        %452 = vperm.xlu0 %451, %v449
        %v453 = vpop.permute.xlu0 %452
        %v455 = vadd.f32 %v448, %v453
        %vm456 = vcmp.gt.f32.partialorder %v455, 0.0
        %v457 = vmul.f32 %v455, 0.01
        %v458 = vsel %vm456, %v455, %v457
        %v459 = vld [vmem:[%s3] sm:$0xf]
        %460 = vset.pattern.permute.xlu0 2
        %461 = vperm.xlu0 %460, %v449
        %v462 = vpop.permute.xlu0 %461
        %v465 = vsel %vm283, %v459, 0
        %467 = vmatpush.bf16.msra.mxu0 0
        %468 = vmatpush.bf16.msra.mxu0 0
        %469 = vmatpush.bf16.msra.mxu0 0
        %470 = vmatpush.bf16.msra.mxu0 0
        %471 = vmatpush.bf16.msra.mxu0 0
        %472 = vmatpush.bf16.msra.mxu0 0
        %473 = vmatpush.bf16.msra.mxu0 0
        %474 = vmatpush.bf16.msra.mxu0 %v312
        %475 = vmatmul.bf16.gmra.mxu0 %v465
        %v476 = vpop.f32.mrf.mxu0
        %v477 = vadd.f32 %v462, %v476
        %v478 = vpop.f32.mrf.mxu0
        %479 = vdwg.mxu0
        %v480 = vadd.f32 %v458, %v477
        %vm481 = vcmp.gt.f32.partialorder %v480, 0.0
        %v482 = vmul.f32 %v480, 0.01
        %v483 = vsel %vm481, %v480, %v482
        %484 = vst [vmem:[%s259] sm:$0xff] %v483
        %s485 = sand.u32 %s156, 1
        %s486 = scalar_lea.sflag [#allocation6], %s485
        %s487 = sand.u32 %s156, 1
        %s488 = smul.addr %s487, 8
        %s489 = scalar_lea.vmem [#allocation7], %s488
        // Predicated region
        $region49: #{tpu_custom_call.1} parent=39 // pred_check
          %p490 = pneg %p166
        $region50: #{tpu_custom_call.1} parent=39 // pred_check_branch
          %492 = sbr.rel (%p490) target = $region52
        $region51: #{tpu_custom_call.1} parent=39 // pred_region
          %494 = vsyncadd %s486, 0
          %s495 = smul.addr %s26, 2
          %s496 = sadd.s32 %s27, %s495
          %s497 = smul.addr %s496, 8
          %s498 = scalar_lea.hbm %s5, %s497
          %s500 = sshll.u32 %s489, 4
          %s501 = int_to_ptr.vmem [resolvable:$true] %s500
          %s502 = sshll.u32 %s498, 4
          %s503 = int_to_ptr.hbm [resolvable:$true] %s502
          %505 = dma.vmem_to_hbm [thread:$0]  %s501, 128, %s503, %s486
        $region52: #{tpu_custom_call.1} parent=39 // pred_fallthru
          _
      $region40: #{tpu_custom_call.1} parent=5 // pred_fallthru
        _
      %p506 = scmp.le.s32.totalorder 2, %s17
      // Predicated region
      $region53: #{tpu_custom_call.1} parent=5 // pred_check
        %p507 = pneg %p506
      $region54: #{tpu_custom_call.1} parent=5 // pred_check_branch
        %509 = sbr.rel (%p507) target = $region56
      $region55: #{tpu_custom_call.1} parent=5 // pred_region
        %s510 = ssub.s32 %s17, 2
        // Predicated region
        $region57: #{tpu_custom_call.1} parent=55 // pred_check
          %p511 = pneg %p172
        $region58: #{tpu_custom_call.1} parent=55 // pred_check_branch
          %513 = sbr.rel (%p511) target = $region60
        $region59: #{tpu_custom_call.1} parent=55 // pred_region
          %s514 = sand.u32 %s157, 1
          %s515 = scalar_lea.sflag [#allocation6], %s514
          %s516 = sand.u32 %s157, 1
          %s517 = smul.addr %s516, 8
          %s518 = scalar_lea.vmem [#allocation7], %s517
          %520 = dma.done %s515, 128
        $region60: #{tpu_custom_call.1} parent=55 // pred_fallthru
          _
      $region56: #{tpu_custom_call.1} parent=5 // pred_fallthru
        _
    $region6: #{tpu_custom_call.1} parent=1 // loop_footer
      %s21 = sadd.s32 1, %s17
    $region7: #{tpu_custom_call.1} parent=1 // loop_footer_branch
      %16 = sbr.rel target = $region3
    $region8: #{tpu_custom_call.1} parent=1 // loop_exit
      _
    %521 = vsyncpa [#allocation5], 1
    %s522 = scalar_lea.sflag [#allocation5], 1
    %523 = vsyncpa %s522, 1
    %524 = vsyncpa [#allocation6], 1
    %s525 = scalar_lea.sflag [#allocation6], 1
    %526 = vsyncpa %s525, 1

</llo_original>
